<compile_context>
chip_gen: v5e
topology: v5e:2x2
jax: 0.10.0
libtpu: 0.0.40
codegen_flags: <defaults>
</compile_context>

<pallas_src>
import functools
import math

import jax
import jax.numpy as jnp
from jax import lax
from jax.experimental import pallas as pl
from jax.experimental.pallas import tpu as pltpu

PAD_ID = 0


def _round_up(x, m):
    return ((x + m - 1) // m) * m


def _row_block(n, target=256):
    for cand in (target, 128, 64, 32, 16, 8):
        if cand <= n and n % cand == 0:
            return cand
    return n


def _vmem_limit_bytes(*bufs):
    """Sum resident-buffer bytes, add 2x headroom (double buffering etc.)."""
    total = 0
    for b in bufs:
        if hasattr(b, "shape"):
            shape, dtype = b.shape, b.dtype
        else:
            shape, dtype = b
        total += math.prod(shape) * jnp.dtype(dtype).itemsize
    return int(min(max(2 * total + (2 << 20), 8 << 20), 64 << 20))


# ----------------------------------------------------------------------------
# Layer-0: fused embedding + input projection for BOTH directions.
# tokens (N,1) int32 -> one-hot (N,V) bf16 -> single matmul against the
# prefolded fused table (V, 6H) bf16 -> split into (N,3H) fwd / bwd outputs.
# ----------------------------------------------------------------------------
def embed_proj_kernel(tok_ref, w_ref, b_ref, of_ref, ob_ref):
    V = w_ref.shape[0]
    G = of_ref.shape[1]                                           # 3H
    tok = tok_ref[...]                                            # (bn, 1)
    iota = lax.broadcasted_iota(jnp.int32, (tok.shape[0], V), 1)
    onehot = (tok == iota).astype(jnp.bfloat16)                   # exact in bf16
    res = jnp.dot(onehot, w_ref[...],
                  preferred_element_type=jnp.float32) + b_ref[...]  # (bn, 6H)
    of_ref[...] = res[:, :G]
    ob_ref[...] = res[:, G:]


def embed_proj(tokens_flat, w_fused, b_fused):
    N = tokens_flat.shape[0]
    G2 = w_fused.shape[1]
    G = G2 // 2
    bn = _row_block(N)
    row = lambda i: (i, 0)
    const = lambda i: (0, 0)
    vmem = _vmem_limit_bytes(((bn, 1), jnp.int32), w_fused, b_fused,
                             ((bn, G2), jnp.float32),
                             ((bn, G2), jnp.float32))
    return pl.pallas_call(
        embed_proj_kernel,
        out_shape=(jax.ShapeDtypeStruct((N, G), jnp.float32),
                   jax.ShapeDtypeStruct((N, G), jnp.float32)),
        grid=(N // bn,),
        in_specs=[pl.BlockSpec((bn, 1), row),
                  pl.BlockSpec(w_fused.shape, const),
                  pl.BlockSpec((1, G2), const)],
        out_specs=(pl.BlockSpec((bn, G), row),
                   pl.BlockSpec((bn, G), row)),
        compiler_params=pltpu.CompilerParams(
            dimension_semantics=("parallel",),
            vmem_limit_bytes=vmem),
    )(tokens_flat, w_fused, b_fused)


# ----------------------------------------------------------------------------
# Layers >= 1: batched input projection of the previous layer's output for
# BOTH directions in a single matmul against the fused (2H, 6H) weight.
# ----------------------------------------------------------------------------
def dense_proj_kernel(x_ref, w_ref, b_ref, of_ref, ob_ref):
    G = of_ref.shape[1]
    x = x_ref[...].astype(jnp.bfloat16)
    res = jnp.dot(x, w_ref[...],
                  preferred_element_type=jnp.float32) + b_ref[...]
    of_ref[...] = res[:, :G]
    ob_ref[...] = res[:, G:]


def dense_proj(x, w_fused, b_fused):
    N, K = x.shape
    G2 = w_fused.shape[1]
    G = G2 // 2
    bn = _row_block(N)
    row = lambda i: (i, 0)
    const = lambda i: (0, 0)
    vmem = _vmem_limit_bytes(((bn, K), jnp.float32), w_fused, b_fused,
                             ((bn, G2), jnp.float32),
                             ((bn, G2), jnp.float32))
    return pl.pallas_call(
        dense_proj_kernel,
        out_shape=(jax.ShapeDtypeStruct((N, G), jnp.float32),
                   jax.ShapeDtypeStruct((N, G), jnp.float32)),
        grid=(N // bn,),
        in_specs=[pl.BlockSpec((bn, K), row),
                  pl.BlockSpec((K, G2), const),
                  pl.BlockSpec((1, G2), const)],
        out_specs=(pl.BlockSpec((bn, G), row),
                   pl.BlockSpec((bn, G), row)),
        compiler_params=pltpu.CompilerParams(
            dimension_semantics=("parallel",),
            vmem_limit_bytes=vmem),
    )(x, w_fused, b_fused)


# ----------------------------------------------------------------------------
# Fused bidirectional GRU layer: single pallas_call, ONE interleaved
# lax.fori_loop over time (forward step t and backward step T-1-t per
# iteration).  Inputs carry the precomputed input-gate pre-activations
# (incl. b_ih); only the fused h @ W_hh (H x 3H) matmul runs per step.
# Gate order: r, z, n.  Packed-sequence semantics: steps with t >= length
# keep h unchanged and emit zeros.  Each direction writes its own disjoint
# lane half of the (T, B, 2H) output (no per-step concat, no fwd scratch).
# ----------------------------------------------------------------------------
def make_bigru_kernel(T, H):
    def kernel(lens_ref, xf_ref, xb_ref, whf_ref, whb_ref, bhf_ref, bhb_ref,
               out_ref, hlast_ref):
        B = xf_ref.shape[1]
        lens = lens_ref[...]                                      # (B, 1) int32

        def gru_step(gi, h, wh_ref, bh_ref):
            gh = (jnp.dot(h, wh_ref[...],
                          preferred_element_type=jnp.float32) + bh_ref[...])
            r = jax.nn.sigmoid(gi[:, 0:H] + gh[:, 0:H])
            z = jax.nn.sigmoid(gi[:, H:2 * H] + gh[:, H:2 * H])
            n = jnp.tanh(gi[:, 2 * H:3 * H] + r * gh[:, 2 * H:3 * H])
            return (1.0 - z) * n + z * h

        h0 = jnp.zeros((B, H), jnp.float32)

        def body(i, carry):
            h_f, h_b = carry
            t_f = i
            t_b = T - 1 - i
            # The two directions are data-independent -> their matmul / EUP /
            # VPU work overlaps inside one iteration.
            hf_new = gru_step(xf_ref[t_f], h_f, whf_ref, bhf_ref)
            hb_new = gru_step(xb_ref[t_b], h_b, whb_ref, bhb_ref)
            vf = (lens > t_f).astype(jnp.float32)                 # (B, 1)
            vb = (lens > t_b).astype(jnp.float32)
            of = vf * hf_new
            ob = vb * hb_new
            out_ref[pl.ds(t_f, 1), :, 0:H] = of[None]
            out_ref[pl.ds(t_b, 1), :, H:2 * H] = ob[None]
            return (of + (1.0 - vf) * h_f, ob + (1.0 - vb) * h_b)

        h_f, h_b = lax.fori_loop(0, T, body, (h0, h0))
        hlast_ref[...] = jnp.concatenate([h_f, h_b], axis=-1)     # (B, 2H)

    return kernel


def bigru_layer(lens, xproj_f, xproj_b, w_hh_f, w_hh_b, b_hh_f, b_hh_b):
    T, B, _ = xproj_f.shape
    H = w_hh_f.shape[0]
    kernel = make_bigru_kernel(T, H)
    vmem = _vmem_limit_bytes(lens, xproj_f, xproj_b, w_hh_f, w_hh_b,
                             b_hh_f, b_hh_b,
                             ((T, B, 2 * H), jnp.float32),
                             ((B, 2 * H), jnp.float32))
    out, hlast = pl.pallas_call(
        kernel,
        out_shape=(jax.ShapeDtypeStruct((T, B, 2 * H), jnp.float32),
                   jax.ShapeDtypeStruct((B, 2 * H), jnp.float32)),
        compiler_params=pltpu.CompilerParams(vmem_limit_bytes=vmem),
    )(lens, xproj_f, xproj_b, w_hh_f, w_hh_b, b_hh_f, b_hh_b)
    return out, hlast


# ----------------------------------------------------------------------------
# Final projection: tanh(Linear(concat(h_fwd, h_bwd)))
# ----------------------------------------------------------------------------
def linear_tanh_kernel(h_ref, w_ref, b_ref, out_ref):
    out_ref[...] = jnp.tanh(
        jnp.dot(h_ref[...], w_ref[...], preferred_element_type=jnp.float32)
        + b_ref[...])


def linear_tanh(h, w, b):
    B = h.shape[0]
    H = w.shape[1]
    return pl.pallas_call(
        linear_tanh_kernel,
        out_shape=jax.ShapeDtypeStruct((B, H), jnp.float32),
        compiler_params=pltpu.CompilerParams(
            vmem_limit_bytes=_vmem_limit_bytes(h, w, b, ((B, H), jnp.float32))),
    )(h, w, b)


# ----------------------------------------------------------------------------
# Parameter init (deterministic; mirrors the module's shapes and U(-0.1, 0.1))
# ----------------------------------------------------------------------------
def init_params(key, vocsize, embed_dim, hidden_size, num_layers):
    keys = iter(jax.random.split(key, 64))
    u = lambda k, shp: jax.random.uniform(k, shp, jnp.float32, -0.1, 0.1)
    p = {}
    emb = u(next(keys), (vocsize, embed_dim))
    p["embed"] = emb.at[PAD_ID].set(0.0)
    for layer in range(num_layers):
        in_dim = embed_dim if layer == 0 else 2 * hidden_size
        for suffix in ("", "_reverse"):
            p[f"w_ih_l{layer}{suffix}"] = u(next(keys), (3 * hidden_size, in_dim))
            p[f"w_hh_l{layer}{suffix}"] = u(next(keys), (3 * hidden_size, hidden_size))
            p[f"b_ih_l{layer}{suffix}"] = u(next(keys), (3 * hidden_size,))
            p[f"b_hh_l{layer}{suffix}"] = u(next(keys), (3 * hidden_size,))
    p["w_out"] = u(next(keys), (hidden_size, 2 * hidden_size))  # PyTorch (out,in)
    p["b_out"] = u(next(keys), (hidden_size,))
    return p


# ----------------------------------------------------------------------------
# Full Encoder.forward
# ----------------------------------------------------------------------------
def encoder_forward(params, src_tokens, *, num_layers, hidden_size):
    B, T = src_tokens.shape
    H = hidden_size

    # src_lengths = T - (# pad tokens), as in the PyTorch forward.
    # NOTE: packed-sequence semantics assume strictly trailing padding.
    pad_mask = (src_tokens == PAD_ID)
    lengths = (T - jnp.sum(pad_mask.astype(jnp.int32), axis=1)).astype(jnp.int32)

    # Pad batch to a sublane multiple; padded rows get length 0 -> stay zero.
    B_pad = max(8, _round_up(B, 8))
    tok_p = jnp.pad(src_tokens.astype(jnp.int32), ((0, B_pad - B), (0, 0)),
                    constant_values=PAD_ID)
    lens_p = jnp.pad(lengths, (0, B_pad - B)).reshape(B_pad, 1)

    # Tiny int32 transpose only; activations are produced time-major directly.
    tok_tm = tok_p.T.reshape(T * B_pad, 1)

    # Layer 0: fold the embedding table into the fused fwd||bwd projection
    # table (V, 6H); matmul operands in bf16, accumulation in f32.
    table_f = jnp.dot(params["embed"], params["w_ih_l0"].T)          # (V, 3H)
    table_b = jnp.dot(params["embed"], params["w_ih_l0_reverse"].T)  # (V, 3H)
    w0 = jnp.concatenate([table_f, table_b], axis=1).astype(jnp.bfloat16)
    b0 = jnp.concatenate([params["b_ih_l0"],
                          params["b_ih_l0_reverse"]]).reshape(1, 6 * H)
    xf_flat, xb_flat = embed_proj(tok_tm, w0, b0)
    xf = xf_flat.reshape(T, B_pad, 3 * H)
    xb = xb_flat.reshape(T, B_pad, 3 * H)
    # F.dropout on embeddings: identity in eval mode.

    out = None
    hlast = None
    for layer in range(num_layers):
        if layer > 0:
            # Hoisted fused input projections for this layer (previous output
            # is time-major and contiguous -> free flatten).
            w = jnp.concatenate(
                [params[f"w_ih_l{layer}"].T,
                 params[f"w_ih_l{layer}_reverse"].T], axis=1).astype(jnp.bfloat16)
            b = jnp.concatenate([params[f"b_ih_l{layer}"],
                                 params[f"b_ih_l{layer}_reverse"]]).reshape(1, 6 * H)
            x_flat = out.reshape(T * B_pad, 2 * H)
            xf_flat, xb_flat = dense_proj(x_flat, w, b)
            xf = xf_flat.reshape(T, B_pad, 3 * H)
            xb = xb_flat.reshape(T, B_pad, 3 * H)
        w_hh_f = params[f"w_hh_l{layer}"].T                           # (H, 3H)
        w_hh_b = params[f"w_hh_l{layer}_reverse"].T
        b_hh_f = params[f"b_hh_l{layer}"].reshape(1, 3 * H)
        b_hh_b = params[f"b_hh_l{layer}_reverse"].reshape(1, 3 * H)
        out, hlast = bigru_layer(lens_p, xf, xb, w_hh_f, w_hh_b,
                                 b_hh_f, b_hh_b)
        # TODO(synk): training-mode inter-layer GRU dropout omitted.

    # Small mem-bound transpose off the recurrence critical path.
    outputs = jnp.swapaxes(out, 0, 1)[:B]                             # (B, T, 2H)
    hidden = linear_tanh(hlast, params["w_out"].T,
                         params["b_out"].reshape(1, H))[:B]           # (B, H)
    return outputs, hidden, lengths


if __name__ == "__main__":
    VOCSIZE, EMBED_DIM, HIDDEN, NUM_LAYERS = 16, 32, 32, 2
    B, T = 2, 8

    key = jax.random.PRNGKey(0)
    kp, kt = jax.random.split(key)
    params = init_params(kp, VOCSIZE, EMBED_DIM, HIDDEN, NUM_LAYERS)

    src_tokens = jax.random.randint(kt, (B, T), 1, VOCSIZE, dtype=jnp.int32)
    src_tokens = src_tokens.at[1, 5:].set(PAD_ID)   # trailing padding, len=5

    fwd = jax.jit(functools.partial(encoder_forward,
                                    num_layers=NUM_LAYERS,
                                    hidden_size=HIDDEN))
    outputs, hidden, lengths = fwd(params, src_tokens)
    jax.block_until_ready((outputs, hidden, lengths))

    # pad_packed_sequence trims to the max length in the batch.
    max_len = int(jnp.max(lengths))
    outputs = outputs[:, :max_len]

    assert outputs.shape == (B, max_len, 2 * HIDDEN)
    assert hidden.shape == (B, HIDDEN)
    assert bool(jnp.all(jnp.isfinite(outputs))) and bool(jnp.all(jnp.isfinite(hidden)))
    # padded timesteps of the shorter sequence must be zero (packed semantics)
    assert bool(jnp.all(outputs[1, 5:] == 0.0))
    print("KERNEL_OK")
</pallas_src>

<mosaic_0001>
module attributes {stable_mosaic.version = 11 : i64} {
  func.func @embed_proj_kernel(%arg0: i32, %arg1: memref<64x1xi32, #tpu.memory_space<vmem>>, %arg2: memref<16x192xbf16, #tpu.memory_space<vmem>>, %arg3: memref<1x192xf32, #tpu.memory_space<vmem>>, %arg4: memref<64x96xf32, #tpu.memory_space<vmem>>, %arg5: memref<64x96xf32, #tpu.memory_space<vmem>>) attributes {dimension_semantics = [#tpu.dimension_semantics<parallel>], iteration_bounds = array<i64: 1>, scalar_prefetch = 0 : i64, scratch_operands = 0 : i64, tpu.core_type = #tpu.core_type<tc>, window_params = [{transform_indices = @transform_0, window_bounds = array<i64: 64, 1>}, {pipeline_mode = #tpu.pipeline_mode<synchronous>, transform_indices = @transform_1, window_bounds = array<i64: 16, 192>}, {pipeline_mode = #tpu.pipeline_mode<synchronous>, transform_indices = @transform_2, window_bounds = array<i64: 1, 192>}, {transform_indices = @transform_3, window_bounds = array<i64: 64, 96>}, {transform_indices = @transform_4, window_bounds = array<i64: 64, 96>}]} {
    %c0 = arith.constant 0 : index
    %c0_0 = arith.constant 0 : index
    %0 = vector.load %arg1[%c0, %c0_0] : memref<64x1xi32, #tpu.memory_space<vmem>>, vector<64x1xi32>
    %1 = tpu.iota {dimensions = array<i32: 1>} : vector<64x16xi32>
    %2 = vector.broadcast %0 : vector<64x1xi32> to vector<64x16xi32>
    %3 = arith.cmpi eq, %2, %1 : vector<64x16xi32>
    %4 = arith.extui %3 : vector<64x16xi1> to vector<64x16xi32>
    %5 = arith.sitofp %4 : vector<64x16xi32> to vector<64x16xf32>
    %6 = arith.truncf %5 : vector<64x16xf32> to vector<64x16xbf16>
    %c0_1 = arith.constant 0 : index
    %c0_2 = arith.constant 0 : index
    %7 = vector.load %arg2[%c0_1, %c0_2] : memref<16x192xbf16, #tpu.memory_space<vmem>>, vector<16x192xbf16>
    %cst = arith.constant dense<0.000000e+00> : vector<64x192xf32>
    %8 = tpu.matmul %6, %7, %cst {dimension_numbers = #tpu.dot_dimension_numbers<[1], [0], [0], [1], [0, 0, 1, 1], [], []>} : vector<64x16xbf16>, vector<16x192xbf16>, vector<64x192xf32> -> vector<64x192xf32>
    %c0_3 = arith.constant 0 : index
    %c0_4 = arith.constant 0 : index
    %9 = vector.load %arg3[%c0_3, %c0_4] : memref<1x192xf32, #tpu.memory_space<vmem>>, vector<1x192xf32>
    %10 = vector.broadcast %9 : vector<1x192xf32> to vector<64x192xf32>
    %11 = arith.addf %8, %10 : vector<64x192xf32>
    %12 = vector.extract_strided_slice %11 {offsets = [0, 0], sizes = [64, 96], strides = [1, 1]} : vector<64x192xf32> to vector<64x96xf32>
    %c0_5 = arith.constant 0 : index
    %c0_6 = arith.constant 0 : index
    %13 = vector.load %arg4[%c0_5, %c0_6] : memref<64x96xf32, #tpu.memory_space<vmem>>, vector<64x96xf32>
    tpu.vector_store %arg4[%c0_5, %c0_6], %12 {strides = array<i32>} : memref<64x96xf32, #tpu.memory_space<vmem>>, vector<64x96xf32>,
    %14 = vector.extract_strided_slice %11 {offsets = [0, 96], sizes = [64, 96], strides = [1, 1]} : vector<64x192xf32> to vector<64x96xf32>
    %c0_7 = arith.constant 0 : index
    %c0_8 = arith.constant 0 : index
    %15 = vector.load %arg5[%c0_7, %c0_8] : memref<64x96xf32, #tpu.memory_space<vmem>>, vector<64x96xf32>
    tpu.vector_store %arg5[%c0_7, %c0_8], %14 {strides = array<i32>} : memref<64x96xf32, #tpu.memory_space<vmem>>, vector<64x96xf32>,
    return
  }
  func.func @transform_0(%arg0: i32) -> (i32, i32) {
    %c0_i32 = arith.constant 0 : i32
    %c0_i32_0 = arith.constant 0 : i32
    return %arg0, %c0_i32 : i32, i32
  }
  func.func @transform_1(%arg0: i32) -> (i32, i32) {
    %c0_i32 = arith.constant 0 : i32
    %c0_i32_0 = arith.constant 0 : i32
    %c0_i32_1 = arith.constant 0 : i32
    return %c0_i32, %c0_i32_0 : i32, i32
  }
  func.func @transform_2(%arg0: i32) -> (i32, i32) {
    %c0_i32 = arith.constant 0 : i32
    %c0_i32_0 = arith.constant 0 : i32
    %c0_i32_1 = arith.constant 0 : i32
    return %c0_i32, %c0_i32_0 : i32, i32
  }
  func.func @transform_3(%arg0: i32) -> (i32, i32) {
    %c0_i32 = arith.constant 0 : i32
    %c0_i32_0 = arith.constant 0 : i32
    return %arg0, %c0_i32 : i32, i32
  }
  func.func @transform_4(%arg0: i32) -> (i32, i32) {
    %c0_i32 = arith.constant 0 : i32
    %c0_i32_0 = arith.constant 0 : i32
    return %arg0, %c0_i32 : i32, i32
  }
}

module attributes {stable_mosaic.version = 11 : i64} {
  func.func @kernel(%arg0: memref<8x1xi32, #tpu.memory_space<vmem>>, %arg1: memref<8x8x96xf32, #tpu.memory_space<vmem>>, %arg2: memref<8x8x96xf32, #tpu.memory_space<vmem>>, %arg3: memref<32x96xf32, #tpu.memory_space<vmem>>, %arg4: memref<32x96xf32, #tpu.memory_space<vmem>>, %arg5: memref<1x96xf32, #tpu.memory_space<vmem>>, %arg6: memref<1x96xf32, #tpu.memory_space<vmem>>, %arg7: memref<8x8x64xf32, #tpu.memory_space<vmem>>, %arg8: memref<8x64xf32, #tpu.memory_space<vmem>>) attributes {dimension_semantics = [], scalar_prefetch = 0 : i64, scratch_operands = 0 : i64, tpu.core_type = #tpu.core_type<tc>} {
    %c0 = arith.constant 0 : index
    %c0_0 = arith.constant 0 : index
    %0 = vector.load %arg0[%c0, %c0_0] : memref<8x1xi32, #tpu.memory_space<vmem>>, vector<8x1xi32>
    %cst = arith.constant 0.000000e+00 : f32
    %1 = vector.broadcast %cst : f32 to vector<8x32xf32>
    %c0_i32 = arith.constant 0 : i32
    %c8_i32 = arith.constant 8 : i32
    %2 = arith.addi %c0_i32, %c8_i32 : i32
    %c1_i32 = arith.constant 1 : i32
    %3:2 = scf.for %arg9 = %c0_i32 to %2 step %c1_i32 iter_args(%arg10 = %1, %arg11 = %1) -> (vector<8x32xf32>, vector<8x32xf32>)  : i32 {
      %c7_i32 = arith.constant 7 : i32
      %6 = arith.subi %c7_i32, %arg9 : i32
      %7 = arith.index_cast %arg9 : i32 to index
      %c0_4 = arith.constant 0 : index
      %c0_5 = arith.constant 0 : index
      %8 = vector.load %arg1[%7, %c0_4, %c0_5] : memref<8x8x96xf32, #tpu.memory_space<vmem>>, vector<1x8x96xf32>
      %9 = vector.shape_cast %8 : vector<1x8x96xf32> to vector<8x96xf32>
      %c0_6 = arith.constant 0 : index
      %c0_7 = arith.constant 0 : index
      %10 = vector.load %arg3[%c0_6, %c0_7] : memref<32x96xf32, #tpu.memory_space<vmem>>, vector<32x96xf32>
      %cst_8 = arith.constant dense<0.000000e+00> : vector<8x96xf32>
      %11 = tpu.matmul %arg10, %10, %cst_8 {dimension_numbers = #tpu.dot_dimension_numbers<[1], [0], [0], [1], [0, 0, 1, 1], [], []>} : vector<8x32xf32>, vector<32x96xf32>, vector<8x96xf32> -> vector<8x96xf32>
      %c0_9 = arith.constant 0 : index
      %c0_10 = arith.constant 0 : index
      %12 = vector.load %arg5[%c0_9, %c0_10] : memref<1x96xf32, #tpu.memory_space<vmem>>, vector<1x96xf32>
      %13 = vector.broadcast %12 : vector<1x96xf32> to vector<8x96xf32>
      %14 = arith.addf %11, %13 : vector<8x96xf32>
      %15 = vector.extract_strided_slice %9 {offsets = [0, 0], sizes = [8, 32], strides = [1, 1]} : vector<8x96xf32> to vector<8x32xf32>
      %16 = vector.extract_strided_slice %14 {offsets = [0, 0], sizes = [8, 32], strides = [1, 1]} : vector<8x96xf32> to vector<8x32xf32>
      %17 = arith.addf %15, %16 : vector<8x32xf32>
      %18 = arith.negf %17 : vector<8x32xf32>
      %19 = math.exp %18 : vector<8x32xf32>
      %cst_11 = arith.constant 1.000000e+00 : f32
      %20 = vector.broadcast %cst_11 : f32 to vector<8x32xf32>
      %21 = arith.addf %20, %19 : vector<8x32xf32>
      %22 = arith.divf %20, %21 : vector<8x32xf32>
      %23 = vector.extract_strided_slice %9 {offsets = [0, 32], sizes = [8, 32], strides = [1, 1]} : vector<8x96xf32> to vector<8x32xf32>
      %24 = vector.extract_strided_slice %14 {offsets = [0, 32], sizes = [8, 32], strides = [1, 1]} : vector<8x96xf32> to vector<8x32xf32>
      %25 = arith.addf %23, %24 : vector<8x32xf32>
      %26 = arith.negf %25 : vector<8x32xf32>
      %27 = math.exp %26 : vector<8x32xf32>
      %cst_12 = arith.constant 1.000000e+00 : f32
      %28 = vector.broadcast %cst_12 : f32 to vector<8x32xf32>
      %29 = arith.addf %28, %27 : vector<8x32xf32>
      %30 = arith.divf %28, %29 : vector<8x32xf32>
      %31 = vector.extract_strided_slice %9 {offsets = [0, 64], sizes = [8, 32], strides = [1, 1]} : vector<8x96xf32> to vector<8x32xf32>
      %32 = vector.extract_strided_slice %14 {offsets = [0, 64], sizes = [8, 32], strides = [1, 1]} : vector<8x96xf32> to vector<8x32xf32>
      %33 = arith.mulf %22, %32 : vector<8x32xf32>
      %34 = arith.addf %31, %33 : vector<8x32xf32>
      %35 = math.tanh %34 : vector<8x32xf32>
      %cst_13 = arith.constant 1.000000e+00 : f32
      %36 = vector.broadcast %cst_13 : f32 to vector<8x32xf32>
      %37 = arith.subf %36, %30 : vector<8x32xf32>
      %38 = arith.mulf %37, %35 : vector<8x32xf32>
      %39 = arith.mulf %30, %arg10 : vector<8x32xf32>
      %40 = arith.addf %38, %39 : vector<8x32xf32>
      %41 = arith.index_cast %6 : i32 to index
      %c0_14 = arith.constant 0 : index
      %c0_15 = arith.constant 0 : index
      %42 = vector.load %arg2[%41, %c0_14, %c0_15] : memref<8x8x96xf32, #tpu.memory_space<vmem>>, vector<1x8x96xf32>
      %43 = vector.shape_cast %42 : vector<1x8x96xf32> to vector<8x96xf32>
      %c0_16 = arith.constant 0 : index
      %c0_17 = arith.constant 0 : index
      %44 = vector.load %arg4[%c0_16, %c0_17] : memref<32x96xf32, #tpu.memory_space<vmem>>, vector<32x96xf32>
      %cst_18 = arith.constant dense<0.000000e+00> : vector<8x96xf32>
      %45 = tpu.matmul %arg11, %44, %cst_18 {dimension_numbers = #tpu.dot_dimension_numbers<[1], [0], [0], [1], [0, 0, 1, 1], [], []>} : vector<8x32xf32>, vector<32x96xf32>, vector<8x96xf32> -> vector<8x96xf32>
      %c0_19 = arith.constant 0 : index
      %c0_20 = arith.constant 0 : index
      %46 = vector.load %arg6[%c0_19, %c0_20] : memref<1x96xf32, #tpu.memory_space<vmem>>, vector<1x96xf32>
      %47 = vector.broadcast %46 : vector<1x96xf32> to vector<8x96xf32>
      %48 = arith.addf %45, %47 : vector<8x96xf32>
      %49 = vector.extract_strided_slice %43 {offsets = [0, 0], sizes = [8, 32], strides = [1, 1]} : vector<8x96xf32> to vector<8x32xf32>
      %50 = vector.extract_strided_slice %48 {offsets = [0, 0], sizes = [8, 32], strides = [1, 1]} : vector<8x96xf32> to vector<8x32xf32>
      %51 = arith.addf %49, %50 : vector<8x32xf32>
      %52 = arith.negf %51 : vector<8x32xf32>
      %53 = math.exp %52 : vector<8x32xf32>
      %cst_21 = arith.constant 1.000000e+00 : f32
      %54 = vector.broadcast %cst_21 : f32 to vector<8x32xf32>
      %55 = arith.addf %54, %53 : vector<8x32xf32>
      %56 = arith.divf %54, %55 : vector<8x32xf32>
      %57 = vector.extract_strided_slice %43 {offsets = [0, 32], sizes = [8, 32], strides = [1, 1]} : vector<8x96xf32> to vector<8x32xf32>
      %58 = vector.extract_strided_slice %48 {offsets = [0, 32], sizes = [8, 32], strides = [1, 1]} : vector<8x96xf32> to vector<8x32xf32>
      %59 = arith.addf %57, %58 : vector<8x32xf32>
      %60 = arith.negf %59 : vector<8x32xf32>
      %61 = math.exp %60 : vector<8x32xf32>
      %cst_22 = arith.constant 1.000000e+00 : f32
      %62 = vector.broadcast %cst_22 : f32 to vector<8x32xf32>
      %63 = arith.addf %62, %61 : vector<8x32xf32>
      %64 = arith.divf %62, %63 : vector<8x32xf32>
      %65 = vector.extract_strided_slice %43 {offsets = [0, 64], sizes = [8, 32], strides = [1, 1]} : vector<8x96xf32> to vector<8x32xf32>
      %66 = vector.extract_strided_slice %48 {offsets = [0, 64], sizes = [8, 32], strides = [1, 1]} : vector<8x96xf32> to vector<8x32xf32>
      %67 = arith.mulf %56, %66 : vector<8x32xf32>
      %68 = arith.addf %65, %67 : vector<8x32xf32>
      %69 = math.tanh %68 : vector<8x32xf32>
      %cst_23 = arith.constant 1.000000e+00 : f32
      %70 = vector.broadcast %cst_23 : f32 to vector<8x32xf32>
      %71 = arith.subf %70, %64 : vector<8x32xf32>
      %72 = arith.mulf %71, %69 : vector<8x32xf32>
      %73 = arith.mulf %64, %arg11 : vector<8x32xf32>
      %74 = arith.addf %72, %73 : vector<8x32xf32>
      %75 = vector.broadcast %arg9 : i32 to vector<8x1xi32>
      %76 = arith.cmpi sgt, %0, %75 : vector<8x1xi32>
      %77 = arith.extui %76 : vector<8x1xi1> to vector<8x1xi32>
      %78 = arith.sitofp %77 : vector<8x1xi32> to vector<8x1xf32>
      %79 = vector.broadcast %6 : i32 to vector<8x1xi32>
      %80 = arith.cmpi sgt, %0, %79 : vector<8x1xi32>
      %81 = arith.extui %80 : vector<8x1xi1> to vector<8x1xi32>
      %82 = arith.sitofp %81 : vector<8x1xi32> to vector<8x1xf32>
      %83 = vector.broadcast %78 : vector<8x1xf32> to vector<8x32xf32>
      %84 = arith.mulf %83, %40 : vector<8x32xf32>
      %85 = vector.broadcast %82 : vector<8x1xf32> to vector<8x32xf32>
      %86 = arith.mulf %85, %74 : vector<8x32xf32>
      %87 = vector.shape_cast %84 : vector<8x32xf32> to vector<1x8x32xf32>
      %88 = arith.index_cast %arg9 : i32 to index
      %c0_24 = arith.constant 0 : index
      %c0_25 = arith.constant 0 : index
      %89 = vector.load %arg7[%88, %c0_24, %c0_25] : memref<8x8x64xf32, #tpu.memory_space<vmem>>, vector<1x8x32xf32>
      tpu.vector_store %arg7[%88, %c0_24, %c0_25], %87 {strides = array<i32>} : memref<8x8x64xf32, #tpu.memory_space<vmem>>, vector<1x8x32xf32>,
      %90 = vector.shape_cast %86 : vector<8x32xf32> to vector<1x8x32xf32>
      %91 = arith.index_cast %6 : i32 to index
      %c0_26 = arith.constant 0 : index
      %c32 = arith.constant 32 : index
      %92 = vector.load %arg7[%91, %c0_26, %c32] : memref<8x8x64xf32, #tpu.memory_space<vmem>>, vector<1x8x32xf32>
      tpu.vector_store %arg7[%91, %c0_26, %c32], %90 {strides = array<i32>} : memref<8x8x64xf32, #tpu.memory_space<vmem>>, vector<1x8x32xf32>,
      %cst_27 = arith.constant 1.000000e+00 : f32
      %93 = vector.broadcast %cst_27 : f32 to vector<8x1xf32>
      %94 = arith.subf %93, %78 : vector<8x1xf32>
      %95 = vector.broadcast %94 : vector<8x1xf32> to vector<8x32xf32>
      %96 = arith.mulf %95, %arg10 : vector<8x32xf32>
      %97 = arith.addf %84, %96 : vector<8x32xf32>
      %cst_28 = arith.constant 1.000000e+00 : f32
      %98 = vector.broadcast %cst_28 : f32 to vector<8x1xf32>
      %99 = arith.subf %98, %82 : vector<8x1xf32>
      %100 = vector.broadcast %99 : vector<8x1xf32> to vector<8x32xf32>
      %101 = arith.mulf %100, %arg11 : vector<8x32xf32>
      %102 = arith.addf %86, %101 : vector<8x32xf32>
      scf.yield %97, %102 : vector<8x32xf32>, vector<8x32xf32>
    }
    %c8_i32_1 = arith.constant 8 : i32
    %4 = tpu.concatenate %3#0, %3#1 in 1 : vector<8x32xf32>, vector<8x32xf32> -> vector<8x64xf32>
    %c0_2 = arith.constant 0 : index
    %c0_3 = arith.constant 0 : index
    %5 = vector.load %arg8[%c0_2, %c0_3] : memref<8x64xf32, #tpu.memory_space<vmem>>, vector<8x64xf32>
    tpu.vector_store %arg8[%c0_2, %c0_3], %4 {strides = array<i32>} : memref<8x64xf32, #tpu.memory_space<vmem>>, vector<8x64xf32>,
    return
  }
}

module attributes {stable_mosaic.version = 11 : i64} {
  func.func @dense_proj_kernel(%arg0: i32, %arg1: memref<64x64xf32, #tpu.memory_space<vmem>>, %arg2: memref<64x192xbf16, #tpu.memory_space<vmem>>, %arg3: memref<1x192xf32, #tpu.memory_space<vmem>>, %arg4: memref<64x96xf32, #tpu.memory_space<vmem>>, %arg5: memref<64x96xf32, #tpu.memory_space<vmem>>) attributes {dimension_semantics = [#tpu.dimension_semantics<parallel>], iteration_bounds = array<i64: 1>, scalar_prefetch = 0 : i64, scratch_operands = 0 : i64, tpu.core_type = #tpu.core_type<tc>, window_params = [{transform_indices = @transform_0, window_bounds = array<i64: 64, 64>}, {pipeline_mode = #tpu.pipeline_mode<synchronous>, transform_indices = @transform_1, window_bounds = array<i64: 64, 192>}, {pipeline_mode = #tpu.pipeline_mode<synchronous>, transform_indices = @transform_2, window_bounds = array<i64: 1, 192>}, {transform_indices = @transform_3, window_bounds = array<i64: 64, 96>}, {transform_indices = @transform_4, window_bounds = array<i64: 64, 96>}]} {
    %c0 = arith.constant 0 : index
    %c0_0 = arith.constant 0 : index
    %0 = vector.load %arg1[%c0, %c0_0] : memref<64x64xf32, #tpu.memory_space<vmem>>, vector<64x64xf32>
    %1 = arith.truncf %0 : vector<64x64xf32> to vector<64x64xbf16>
    %c0_1 = arith.constant 0 : index
    %c0_2 = arith.constant 0 : index
    %2 = vector.load %arg2[%c0_1, %c0_2] : memref<64x192xbf16, #tpu.memory_space<vmem>>, vector<64x192xbf16>
    %cst = arith.constant dense<0.000000e+00> : vector<64x192xf32>
    %3 = tpu.matmul %1, %2, %cst {dimension_numbers = #tpu.dot_dimension_numbers<[1], [0], [0], [1], [0, 0, 1, 1], [], []>} : vector<64x64xbf16>, vector<64x192xbf16>, vector<64x192xf32> -> vector<64x192xf32>
    %c0_3 = arith.constant 0 : index
    %c0_4 = arith.constant 0 : index
    %4 = vector.load %arg3[%c0_3, %c0_4] : memref<1x192xf32, #tpu.memory_space<vmem>>, vector<1x192xf32>
    %5 = vector.broadcast %4 : vector<1x192xf32> to vector<64x192xf32>
    %6 = arith.addf %3, %5 : vector<64x192xf32>
    %7 = vector.extract_strided_slice %6 {offsets = [0, 0], sizes = [64, 96], strides = [1, 1]} : vector<64x192xf32> to vector<64x96xf32>
    %c0_5 = arith.constant 0 : index
    %c0_6 = arith.constant 0 : index
    %8 = vector.load %arg4[%c0_5, %c0_6] : memref<64x96xf32, #tpu.memory_space<vmem>>, vector<64x96xf32>
    tpu.vector_store %arg4[%c0_5, %c0_6], %7 {strides = array<i32>} : memref<64x96xf32, #tpu.memory_space<vmem>>, vector<64x96xf32>,
    %9 = vector.extract_strided_slice %6 {offsets = [0, 96], sizes = [64, 96], strides = [1, 1]} : vector<64x192xf32> to vector<64x96xf32>
    %c0_7 = arith.constant 0 : index
    %c0_8 = arith.constant 0 : index
    %10 = vector.load %arg5[%c0_7, %c0_8] : memref<64x96xf32, #tpu.memory_space<vmem>>, vector<64x96xf32>
    tpu.vector_store %arg5[%c0_7, %c0_8], %9 {strides = array<i32>} : memref<64x96xf32, #tpu.memory_space<vmem>>, vector<64x96xf32>,
    return
  }
  func.func @transform_0(%arg0: i32) -> (i32, i32) {
    %c0_i32 = arith.constant 0 : i32
    %c0_i32_0 = arith.constant 0 : i32
    return %arg0, %c0_i32 : i32, i32
  }
  func.func @transform_1(%arg0: i32) -> (i32, i32) {
    %c0_i32 = arith.constant 0 : i32
    %c0_i32_0 = arith.constant 0 : i32
    %c0_i32_1 = arith.constant 0 : i32
    return %c0_i32, %c0_i32_0 : i32, i32
  }
  func.func @transform_2(%arg0: i32) -> (i32, i32) {
    %c0_i32 = arith.constant 0 : i32
    %c0_i32_0 = arith.constant 0 : i32
    %c0_i32_1 = arith.constant 0 : i32
    return %c0_i32, %c0_i32_0 : i32, i32
  }
  func.func @transform_3(%arg0: i32) -> (i32, i32) {
    %c0_i32 = arith.constant 0 : i32
    %c0_i32_0 = arith.constant 0 : i32
    return %arg0, %c0_i32 : i32, i32
  }
  func.func @transform_4(%arg0: i32) -> (i32, i32) {
    %c0_i32 = arith.constant 0 : i32
    %c0_i32_0 = arith.constant 0 : i32
    return %arg0, %c0_i32 : i32, i32
  }
}

module attributes {stable_mosaic.version = 11 : i64} {
  func.func @kernel(%arg0: memref<8x1xi32, #tpu.memory_space<vmem>>, %arg1: memref<8x8x96xf32, #tpu.memory_space<vmem>>, %arg2: memref<8x8x96xf32, #tpu.memory_space<vmem>>, %arg3: memref<32x96xf32, #tpu.memory_space<vmem>>, %arg4: memref<32x96xf32, #tpu.memory_space<vmem>>, %arg5: memref<1x96xf32, #tpu.memory_space<vmem>>, %arg6: memref<1x96xf32, #tpu.memory_space<vmem>>, %arg7: memref<8x8x64xf32, #tpu.memory_space<vmem>>, %arg8: memref<8x64xf32, #tpu.memory_space<vmem>>) attributes {dimension_semantics = [], scalar_prefetch = 0 : i64, scratch_operands = 0 : i64, tpu.core_type = #tpu.core_type<tc>} {
    %c0 = arith.constant 0 : index
    %c0_0 = arith.constant 0 : index
    %0 = vector.load %arg0[%c0, %c0_0] : memref<8x1xi32, #tpu.memory_space<vmem>>, vector<8x1xi32>
    %cst = arith.constant 0.000000e+00 : f32
    %1 = vector.broadcast %cst : f32 to vector<8x32xf32>
    %c0_i32 = arith.constant 0 : i32
    %c8_i32 = arith.constant 8 : i32
    %2 = arith.addi %c0_i32, %c8_i32 : i32
    %c1_i32 = arith.constant 1 : i32
    %3:2 = scf.for %arg9 = %c0_i32 to %2 step %c1_i32 iter_args(%arg10 = %1, %arg11 = %1) -> (vector<8x32xf32>, vector<8x32xf32>)  : i32 {
      %c7_i32 = arith.constant 7 : i32
      %6 = arith.subi %c7_i32, %arg9 : i32
      %7 = arith.index_cast %arg9 : i32 to index
      %c0_4 = arith.constant 0 : index
      %c0_5 = arith.constant 0 : index
      %8 = vector.load %arg1[%7, %c0_4, %c0_5] : memref<8x8x96xf32, #tpu.memory_space<vmem>>, vector<1x8x96xf32>
      %9 = vector.shape_cast %8 : vector<1x8x96xf32> to vector<8x96xf32>
      %c0_6 = arith.constant 0 : index
      %c0_7 = arith.constant 0 : index
      %10 = vector.load %arg3[%c0_6, %c0_7] : memref<32x96xf32, #tpu.memory_space<vmem>>, vector<32x96xf32>
      %cst_8 = arith.constant dense<0.000000e+00> : vector<8x96xf32>
      %11 = tpu.matmul %arg10, %10, %cst_8 {dimension_numbers = #tpu.dot_dimension_numbers<[1], [0], [0], [1], [0, 0, 1, 1], [], []>} : vector<8x32xf32>, vector<32x96xf32>, vector<8x96xf32> -> vector<8x96xf32>
      %c0_9 = arith.constant 0 : index
      %c0_10 = arith.constant 0 : index
      %12 = vector.load %arg5[%c0_9, %c0_10] : memref<1x96xf32, #tpu.memory_space<vmem>>, vector<1x96xf32>
      %13 = vector.broadcast %12 : vector<1x96xf32> to vector<8x96xf32>
      %14 = arith.addf %11, %13 : vector<8x96xf32>
      %15 = vector.extract_strided_slice %9 {offsets = [0, 0], sizes = [8, 32], strides = [1, 1]} : vector<8x96xf32> to vector<8x32xf32>
      %16 = vector.extract_strided_slice %14 {offsets = [0, 0], sizes = [8, 32], strides = [1, 1]} : vector<8x96xf32> to vector<8x32xf32>
      %17 = arith.addf %15, %16 : vector<8x32xf32>
      %18 = arith.negf %17 : vector<8x32xf32>
      %19 = math.exp %18 : vector<8x32xf32>
      %cst_11 = arith.constant 1.000000e+00 : f32
      %20 = vector.broadcast %cst_11 : f32 to vector<8x32xf32>
      %21 = arith.addf %20, %19 : vector<8x32xf32>
      %22 = arith.divf %20, %21 : vector<8x32xf32>
      %23 = vector.extract_strided_slice %9 {offsets = [0, 32], sizes = [8, 32], strides = [1, 1]} : vector<8x96xf32> to vector<8x32xf32>
      %24 = vector.extract_strided_slice %14 {offsets = [0, 32], sizes = [8, 32], strides = [1, 1]} : vector<8x96xf32> to vector<8x32xf32>
      %25 = arith.addf %23, %24 : vector<8x32xf32>
      %26 = arith.negf %25 : vector<8x32xf32>
      %27 = math.exp %26 : vector<8x32xf32>
      %cst_12 = arith.constant 1.000000e+00 : f32
      %28 = vector.broadcast %cst_12 : f32 to vector<8x32xf32>
      %29 = arith.addf %28, %27 : vector<8x32xf32>
      %30 = arith.divf %28, %29 : vector<8x32xf32>
      %31 = vector.extract_strided_slice %9 {offsets = [0, 64], sizes = [8, 32], strides = [1, 1]} : vector<8x96xf32> to vector<8x32xf32>
      %32 = vector.extract_strided_slice %14 {offsets = [0, 64], sizes = [8, 32], strides = [1, 1]} : vector<8x96xf32> to vector<8x32xf32>
      %33 = arith.mulf %22, %32 : vector<8x32xf32>
      %34 = arith.addf %31, %33 : vector<8x32xf32>
      %35 = math.tanh %34 : vector<8x32xf32>
      %cst_13 = arith.constant 1.000000e+00 : f32
      %36 = vector.broadcast %cst_13 : f32 to vector<8x32xf32>
      %37 = arith.subf %36, %30 : vector<8x32xf32>
      %38 = arith.mulf %37, %35 : vector<8x32xf32>
      %39 = arith.mulf %30, %arg10 : vector<8x32xf32>
      %40 = arith.addf %38, %39 : vector<8x32xf32>
      %41 = arith.index_cast %6 : i32 to index
      %c0_14 = arith.constant 0 : index
      %c0_15 = arith.constant 0 : index
      %42 = vector.load %arg2[%41, %c0_14, %c0_15] : memref<8x8x96xf32, #tpu.memory_space<vmem>>, vector<1x8x96xf32>
      %43 = vector.shape_cast %42 : vector<1x8x96xf32> to vector<8x96xf32>
      %c0_16 = arith.constant 0 : index
      %c0_17 = arith.constant 0 : index
      %44 = vector.load %arg4[%c0_16, %c0_17] : memref<32x96xf32, #tpu.memory_space<vmem>>, vector<32x96xf32>
      %cst_18 = arith.constant dense<0.000000e+00> : vector<8x96xf32>
      %45 = tpu.matmul %arg11, %44, %cst_18 {dimension_numbers = #tpu.dot_dimension_numbers<[1], [0], [0], [1], [0, 0, 1, 1], [], []>} : vector<8x32xf32>, vector<32x96xf32>, vector<8x96xf32> -> vector<8x96xf32>
      %c0_19 = arith.constant 0 : index
      %c0_20 = arith.constant 0 : index
      %46 = vector.load %arg6[%c0_19, %c0_20] : memref<1x96xf32, #tpu.memory_space<vmem>>, vector<1x96xf32>
      %47 = vector.broadcast %46 : vector<1x96xf32> to vector<8x96xf32>
      %48 = arith.addf %45, %47 : vector<8x96xf32>
      %49 = vector.extract_strided_slice %43 {offsets = [0, 0], sizes = [8, 32], strides = [1, 1]} : vector<8x96xf32> to vector<8x32xf32>
      %50 = vector.extract_strided_slice %48 {offsets = [0, 0], sizes = [8, 32], strides = [1, 1]} : vector<8x96xf32> to vector<8x32xf32>
      %51 = arith.addf %49, %50 : vector<8x32xf32>
      %52 = arith.negf %51 : vector<8x32xf32>
      %53 = math.exp %52 : vector<8x32xf32>
      %cst_21 = arith.constant 1.000000e+00 : f32
      %54 = vector.broadcast %cst_21 : f32 to vector<8x32xf32>
      %55 = arith.addf %54, %53 : vector<8x32xf32>
      %56 = arith.divf %54, %55 : vector<8x32xf32>
      %57 = vector.extract_strided_slice %43 {offsets = [0, 32], sizes = [8, 32], strides = [1, 1]} : vector<8x96xf32> to vector<8x32xf32>
      %58 = vector.extract_strided_slice %48 {offsets = [0, 32], sizes = [8, 32], strides = [1, 1]} : vector<8x96xf32> to vector<8x32xf32>
      %59 = arith.addf %57, %58 : vector<8x32xf32>
      %60 = arith.negf %59 : vector<8x32xf32>
      %61 = math.exp %60 : vector<8x32xf32>
      %cst_22 = arith.constant 1.000000e+00 : f32
      %62 = vector.broadcast %cst_22 : f32 to vector<8x32xf32>
      %63 = arith.addf %62, %61 : vector<8x32xf32>
      %64 = arith.divf %62, %63 : vector<8x32xf32>
      %65 = vector.extract_strided_slice %43 {offsets = [0, 64], sizes = [8, 32], strides = [1, 1]} : vector<8x96xf32> to vector<8x32xf32>
      %66 = vector.extract_strided_slice %48 {offsets = [0, 64], sizes = [8, 32], strides = [1, 1]} : vector<8x96xf32> to vector<8x32xf32>
      %67 = arith.mulf %56, %66 : vector<8x32xf32>
      %68 = arith.addf %65, %67 : vector<8x32xf32>
      %69 = math.tanh %68 : vector<8x32xf32>
      %cst_23 = arith.constant 1.000000e+00 : f32
      %70 = vector.broadcast %cst_23 : f32 to vector<8x32xf32>
      %71 = arith.subf %70, %64 : vector<8x32xf32>
      %72 = arith.mulf %71, %69 : vector<8x32xf32>
      %73 = arith.mulf %64, %arg11 : vector<8x32xf32>
      %74 = arith.addf %72, %73 : vector<8x32xf32>
      %75 = vector.broadcast %arg9 : i32 to vector<8x1xi32>
      %76 = arith.cmpi sgt, %0, %75 : vector<8x1xi32>
      %77 = arith.extui %76 : vector<8x1xi1> to vector<8x1xi32>
      %78 = arith.sitofp %77 : vector<8x1xi32> to vector<8x1xf32>
      %79 = vector.broadcast %6 : i32 to vector<8x1xi32>
      %80 = arith.cmpi sgt, %0, %79 : vector<8x1xi32>
      %81 = arith.extui %80 : vector<8x1xi1> to vector<8x1xi32>
      %82 = arith.sitofp %81 : vector<8x1xi32> to vector<8x1xf32>
      %83 = vector.broadcast %78 : vector<8x1xf32> to vector<8x32xf32>
      %84 = arith.mulf %83, %40 : vector<8x32xf32>
      %85 = vector.broadcast %82 : vector<8x1xf32> to vector<8x32xf32>
      %86 = arith.mulf %85, %74 : vector<8x32xf32>
      %87 = vector.shape_cast %84 : vector<8x32xf32> to vector<1x8x32xf32>
      %88 = arith.index_cast %arg9 : i32 to index
      %c0_24 = arith.constant 0 : index
      %c0_25 = arith.constant 0 : index
      %89 = vector.load %arg7[%88, %c0_24, %c0_25] : memref<8x8x64xf32, #tpu.memory_space<vmem>>, vector<1x8x32xf32>
      tpu.vector_store %arg7[%88, %c0_24, %c0_25], %87 {strides = array<i32>} : memref<8x8x64xf32, #tpu.memory_space<vmem>>, vector<1x8x32xf32>,
      %90 = vector.shape_cast %86 : vector<8x32xf32> to vector<1x8x32xf32>
      %91 = arith.index_cast %6 : i32 to index
      %c0_26 = arith.constant 0 : index
      %c32 = arith.constant 32 : index
      %92 = vector.load %arg7[%91, %c0_26, %c32] : memref<8x8x64xf32, #tpu.memory_space<vmem>>, vector<1x8x32xf32>
      tpu.vector_store %arg7[%91, %c0_26, %c32], %90 {strides = array<i32>} : memref<8x8x64xf32, #tpu.memory_space<vmem>>, vector<1x8x32xf32>,
      %cst_27 = arith.constant 1.000000e+00 : f32
      %93 = vector.broadcast %cst_27 : f32 to vector<8x1xf32>
      %94 = arith.subf %93, %78 : vector<8x1xf32>
      %95 = vector.broadcast %94 : vector<8x1xf32> to vector<8x32xf32>
      %96 = arith.mulf %95, %arg10 : vector<8x32xf32>
      %97 = arith.addf %84, %96 : vector<8x32xf32>
      %cst_28 = arith.constant 1.000000e+00 : f32
      %98 = vector.broadcast %cst_28 : f32 to vector<8x1xf32>
      %99 = arith.subf %98, %82 : vector<8x1xf32>
      %100 = vector.broadcast %99 : vector<8x1xf32> to vector<8x32xf32>
      %101 = arith.mulf %100, %arg11 : vector<8x32xf32>
      %102 = arith.addf %86, %101 : vector<8x32xf32>
      scf.yield %97, %102 : vector<8x32xf32>, vector<8x32xf32>
    }
    %c8_i32_1 = arith.constant 8 : i32
    %4 = tpu.concatenate %3#0, %3#1 in 1 : vector<8x32xf32>, vector<8x32xf32> -> vector<8x64xf32>
    %c0_2 = arith.constant 0 : index
    %c0_3 = arith.constant 0 : index
    %5 = vector.load %arg8[%c0_2, %c0_3] : memref<8x64xf32, #tpu.memory_space<vmem>>, vector<8x64xf32>
    tpu.vector_store %arg8[%c0_2, %c0_3], %4 {strides = array<i32>} : memref<8x64xf32, #tpu.memory_space<vmem>>, vector<8x64xf32>,
    return
  }
}

module attributes {stable_mosaic.version = 11 : i64} {
  func.func @linear_tanh_kernel(%arg0: memref<8x64xf32, #tpu.memory_space<vmem>>, %arg1: memref<64x32xf32, #tpu.memory_space<vmem>>, %arg2: memref<1x32xf32, #tpu.memory_space<vmem>>, %arg3: memref<8x32xf32, #tpu.memory_space<vmem>>) attributes {dimension_semantics = [], scalar_prefetch = 0 : i64, scratch_operands = 0 : i64, tpu.core_type = #tpu.core_type<tc>} {
    %c0 = arith.constant 0 : index
    %c0_0 = arith.constant 0 : index
    %0 = vector.load %arg0[%c0, %c0_0] : memref<8x64xf32, #tpu.memory_space<vmem>>, vector<8x64xf32>
    %c0_1 = arith.constant 0 : index
    %c0_2 = arith.constant 0 : index
    %1 = vector.load %arg1[%c0_1, %c0_2] : memref<64x32xf32, #tpu.memory_space<vmem>>, vector<64x32xf32>
    %cst = arith.constant dense<0.000000e+00> : vector<8x32xf32>
    %2 = tpu.matmul %0, %1, %cst {dimension_numbers = #tpu.dot_dimension_numbers<[1], [0], [0], [1], [0, 0, 1, 1], [], []>} : vector<8x64xf32>, vector<64x32xf32>, vector<8x32xf32> -> vector<8x32xf32>
    %c0_3 = arith.constant 0 : index
    %c0_4 = arith.constant 0 : index
    %3 = vector.load %arg2[%c0_3, %c0_4] : memref<1x32xf32, #tpu.memory_space<vmem>>, vector<1x32xf32>
    %4 = vector.broadcast %3 : vector<1x32xf32> to vector<8x32xf32>
    %5 = arith.addf %2, %4 : vector<8x32xf32>
    %6 = math.tanh %5 : vector<8x32xf32>
    %c0_5 = arith.constant 0 : index
    %c0_6 = arith.constant 0 : index
    %7 = vector.load %arg3[%c0_5, %c0_6] : memref<8x32xf32, #tpu.memory_space<vmem>>, vector<8x32xf32>
    tpu.vector_store %arg3[%c0_5, %c0_6], %6 {strides = array<i32>} : memref<8x32xf32, #tpu.memory_space<vmem>>, vector<8x32xf32>,
    return
  }
}

</mosaic_0001>

<llo_original>
// kernel: encoder_forward.5
$region0: #{encoder_forward.5}
  #allocation0 [shape = 'u32[]', space=smem, size = 0x4, offset = 0x4, fixed_abs, tag = 'smem constant byte address 0x4 - core index']
  #allocation1 [shape = 'u32[72,128]{1,0:T(1,128)}', space=vmem, size = 0x9000, scoped, tag = 'internal scratch']
  %s0 = inlined_call_operand.vmem [shape: s32[64,1], index: 0, kind: input, shape index: {}]
  %s1 = inlined_call_operand.vmem [shape: bf16[16,192], index: 1, kind: input, shape index: {}]
  %s2 = inlined_call_operand.vmem [shape: f32[1,192], index: 2, kind: input, shape index: {}]
  %s3 = inlined_call_operand.vmem [shape: f32[64,96], index: 3, kind: output, shape index: {0}]
  %s4 = inlined_call_operand.vmem [shape: f32[64,96], index: 4, kind: output, shape index: {1}]
  %5 = xla_tuple %s3, %s4
  %s6 = sld [smem:[#allocation0]]
  $region30: #{encoder_forward.5} parent=0
    _
  %s8 = ssub.s32 1, %s6
  %s9 = scalar_select 0, %s8, %s6
  // Predicated region
  $region2: #{encoder_forward.5} parent=0 // pred_check
    _
  $region3: #{encoder_forward.5} parent=0 // pred_check_branch
    %11 = sbr.rel (0) target = $region5
  $region4: #{encoder_forward.5} parent=0 // pred_region
    _
  $region5: #{encoder_forward.5} parent=0 // pred_fallthru
    _
  // Predicated region
  $region6: #{encoder_forward.5} parent=0 // pred_check
    _
  $region7: #{encoder_forward.5} parent=0 // pred_check_branch
    %13 = sbr.rel (0) target = $region9
  $region8: #{encoder_forward.5} parent=0 // pred_region
    _
  $region9: #{encoder_forward.5} parent=0 // pred_fallthru
    _
  // Predicated region
  $region10: #{encoder_forward.5} parent=0 // pred_check
    _
  $region11: #{encoder_forward.5} parent=0 // pred_check_branch
    %15 = sbr.rel (0) target = $region13
  $region12: #{encoder_forward.5} parent=0 // pred_region
    _
  $region13: #{encoder_forward.5} parent=0 // pred_fallthru
    _
  %v17 = vld [vmem:[%s0] sm:$0xff]
  %v18 = vld [vmem:[%s0 + $0x8] sm:$0xff]
  %v19 = vld [vmem:[%s0 + $0x10] sm:$0xff]
  %v20 = vld [vmem:[%s0 + $0x18] sm:$0xff]
  %v21 = vld [vmem:[%s0 + $0x20] sm:$0xff]
  %v22 = vld [vmem:[%s0 + $0x28] sm:$0xff]
  %v23 = vld [vmem:[%s0 + $0x30] sm:$0xff]
  %v24 = vld [vmem:[%s0 + $0x38] sm:$0xff]
  %v25 = vlaneseq
  %v26 = vand.u32 %v25, 127
  %27 = vset.pattern.permute.xlu0 0
  %28 = vperm.xlu0 %27, %v17
  %v29 = vpop.permute.xlu0 %28
  %30 = vset.pattern.permute.xlu0 0
  %31 = vperm.xlu0 %30, %v18
  %v32 = vpop.permute.xlu0 %31
  %33 = vset.pattern.permute.xlu0 0
  %34 = vperm.xlu0 %33, %v19
  %v35 = vpop.permute.xlu0 %34
  %36 = vset.pattern.permute.xlu0 0
  %37 = vperm.xlu0 %36, %v20
  %v38 = vpop.permute.xlu0 %37
  %39 = vset.pattern.permute.xlu0 0
  %40 = vperm.xlu0 %39, %v21
  %v41 = vpop.permute.xlu0 %40
  %42 = vset.pattern.permute.xlu0 0
  %43 = vperm.xlu0 %42, %v22
  %v44 = vpop.permute.xlu0 %43
  %45 = vset.pattern.permute.xlu0 0
  %46 = vperm.xlu0 %45, %v23
  %v47 = vpop.permute.xlu0 %46
  %48 = vset.pattern.permute.xlu0 0
  %49 = vperm.xlu0 %48, %v24
  %v50 = vpop.permute.xlu0 %49
  %vm51 = vcmp.eq.s32.totalorder %v29, %v26
  %vm52 = vcmp.eq.s32.totalorder %v32, %v26
  %vm53 = vcmp.eq.s32.totalorder %v35, %v26
  %vm54 = vcmp.eq.s32.totalorder %v38, %v26
  %vm55 = vcmp.eq.s32.totalorder %v41, %v26
  %vm56 = vcmp.eq.s32.totalorder %v44, %v26
  %vm57 = vcmp.eq.s32.totalorder %v47, %v26
  %vm58 = vcmp.eq.s32.totalorder %v50, %v26
  %v59 = vsel %vm51, 1, 0
  %v60 = vsel %vm52, 1, 0
  %v61 = vsel %vm53, 1, 0
  %v62 = vsel %vm54, 1, 0
  %v63 = vsel %vm55, 1, 0
  %v64 = vsel %vm56, 1, 0
  %v65 = vsel %vm57, 1, 0
  %v66 = vsel %vm58, 1, 0
  %v67 = vcvt.s32.f32 %v59
  %v68 = vcvt.s32.f32 %v60
  %v69 = vcvt.s32.f32 %v61
  %v70 = vcvt.s32.f32 %v62
  %v71 = vcvt.s32.f32 %v63
  %v72 = vcvt.s32.f32 %v64
  %v73 = vcvt.s32.f32 %v65
  %v74 = vcvt.s32.f32 %v66
  %v75 = vpack.c.bf16 %v68, %v67
  %v76 = vpack.c.bf16 %v70, %v69
  %v77 = vpack.c.bf16 %v72, %v71
  %v78 = vpack.c.bf16 %v74, %v73
  %v79 = vld [vmem:[%s1] sm:$0xff]
  %v80 = vld [vmem:[%s1 + $0x8] sm:$0xff]
  %v81 = vld [vmem:[%s2] sm:$0x3]
  %v83 = vperm.slane %v81, 0
  %v84 = vperm.slane %v81, 1
  %v89 = vunpack.c.l.b16 %v79
  %v90 = vunpack.c.h.b16 %v79
  %v91 = vunpack.c.l.b16 %v80
  %v92 = vunpack.c.h.b16 %v80
  %v93 = vpack.c.b16 %v91, %v89
  %v94 = vpack.c.b16 %v92, %v90
  %vm97 = vcmask 130048
  %v99 = vsel %vm97, %v75, 0
  %v102 = vsel %vm97, %v76, 0
  %v105 = vsel %vm97, %v77, 0
  %v108 = vsel %vm97, %v78, 0
  %110 = vmatpush.bf16.msra.mxu0 0
  %111 = vmatpush.bf16.msra.mxu0 0
  %112 = vmatpush.bf16.msra.mxu0 0
  %113 = vmatpush.bf16.msra.mxu0 0
  %114 = vmatpush.bf16.msra.mxu0 0
  %115 = vmatpush.bf16.msra.mxu0 0
  %116 = vmatpush.bf16.msra.mxu0 0
  %117 = vmatpush.bf16.msra.mxu0 %v93
  %118 = vmatmul.bf16.gmra.mxu0 %v99
  %v119 = vpop.f32.mrf.mxu0
  %v120 = vadd.f32 %v83, %v119
  %v121 = vpop.f32.mrf.mxu0
  %v122 = vadd.f32 %v83, %v121
  %123 = vmatmul.bf16.gmra.mxu0 %v102
  %v124 = vpop.f32.mrf.mxu0
  %v125 = vadd.f32 %v83, %v124
  %v126 = vpop.f32.mrf.mxu0
  %v127 = vadd.f32 %v83, %v126
  %128 = vmatmul.bf16.gmra.mxu0 %v105
  %v129 = vpop.f32.mrf.mxu0
  %v130 = vadd.f32 %v83, %v129
  %v131 = vpop.f32.mrf.mxu0
  %v132 = vadd.f32 %v83, %v131
  %133 = vmatmul.bf16.gmra.mxu0 %v108
  %v134 = vpop.f32.mrf.mxu0
  %v135 = vadd.f32 %v83, %v134
  %v136 = vpop.f32.mrf.mxu0
  %v137 = vadd.f32 %v83, %v136
  %138 = vdwg.mxu0
  %139 = vmatpush.bf16.msra.mxu0 0
  %140 = vmatpush.bf16.msra.mxu0 0
  %141 = vmatpush.bf16.msra.mxu0 0
  %142 = vmatpush.bf16.msra.mxu0 0
  %143 = vmatpush.bf16.msra.mxu0 0
  %144 = vmatpush.bf16.msra.mxu0 0
  %145 = vmatpush.bf16.msra.mxu0 0
  %146 = vmatpush.bf16.msra.mxu0 %v94
  %147 = vmatmul.bf16.gmra.mxu0 %v99
  %v148 = vpop.f32.mrf.mxu0
  %v149 = vadd.f32 %v84, %v148
  %v150 = vpop.f32.mrf.mxu0
  %v151 = vadd.f32 %v84, %v150
  %152 = vmatmul.bf16.gmra.mxu0 %v102
  %v153 = vpop.f32.mrf.mxu0
  %v154 = vadd.f32 %v84, %v153
  %v155 = vpop.f32.mrf.mxu0
  %v156 = vadd.f32 %v84, %v155
  %157 = vmatmul.bf16.gmra.mxu0 %v105
  %v158 = vpop.f32.mrf.mxu0
  %v159 = vadd.f32 %v84, %v158
  %v160 = vpop.f32.mrf.mxu0
  %v161 = vadd.f32 %v84, %v160
  %162 = vmatmul.bf16.gmra.mxu0 %v108
  %v163 = vpop.f32.mrf.mxu0
  %v164 = vadd.f32 %v84, %v163
  %v165 = vpop.f32.mrf.mxu0
  %v166 = vadd.f32 %v84, %v165
  %167 = vdwg.mxu0
  %vm168 = vcmask 785408
  %169 = vst.msk [vmem:[%s3] sm:$0xff] %vm168, %v120
  %170 = vst.msk [vmem:[%s3 + $0x8] sm:$0xff] %vm168, %v122
  %171 = vst.msk [vmem:[%s3 + $0x10] sm:$0xff] %vm168, %v125
  %172 = vst.msk [vmem:[%s3 + $0x18] sm:$0xff] %vm168, %v127
  %173 = vst.msk [vmem:[%s3 + $0x20] sm:$0xff] %vm168, %v130
  %174 = vst.msk [vmem:[%s3 + $0x28] sm:$0xff] %vm168, %v132
  %175 = vst.msk [vmem:[%s3 + $0x30] sm:$0xff] %vm168, %v135
  %176 = vst.msk [vmem:[%s3 + $0x38] sm:$0xff] %vm168, %v137
  %193 = vrot.lane.b32.xlu0 %v120, 32
  %v194 = vpop.permute.xlu0 %193
  %195 = vrot.lane.b32.xlu0 %v149, 32
  %v196 = vpop.permute.xlu0 %195
  %197 = vrot.lane.b32.xlu0 %v122, 32
  %v198 = vpop.permute.xlu0 %197
  %199 = vrot.lane.b32.xlu0 %v151, 32
  %v200 = vpop.permute.xlu0 %199
  %201 = vrot.lane.b32.xlu0 %v125, 32
  %v202 = vpop.permute.xlu0 %201
  %203 = vrot.lane.b32.xlu0 %v154, 32
  %v204 = vpop.permute.xlu0 %203
  %205 = vrot.lane.b32.xlu0 %v127, 32
  %v206 = vpop.permute.xlu0 %205
  %207 = vrot.lane.b32.xlu0 %v156, 32
  %v208 = vpop.permute.xlu0 %207
  %209 = vrot.lane.b32.xlu0 %v130, 32
  %v210 = vpop.permute.xlu0 %209
  %211 = vrot.lane.b32.xlu0 %v159, 32
  %v212 = vpop.permute.xlu0 %211
  %213 = vrot.lane.b32.xlu0 %v132, 32
  %v214 = vpop.permute.xlu0 %213
  %215 = vrot.lane.b32.xlu0 %v161, 32
  %v216 = vpop.permute.xlu0 %215
  %217 = vrot.lane.b32.xlu0 %v135, 32
  %v218 = vpop.permute.xlu0 %217
  %219 = vrot.lane.b32.xlu0 %v164, 32
  %v220 = vpop.permute.xlu0 %219
  %221 = vrot.lane.b32.xlu0 %v137, 32
  %v222 = vpop.permute.xlu0 %221
  %223 = vrot.lane.b32.xlu0 %v166, 32
  %v224 = vpop.permute.xlu0 %223
  %vm225 = vcmask 261120
  %v226 = vsel %vm225, %v194, %v196
  %v227 = vsel %vm225, %v198, %v200
  %v228 = vsel %vm225, %v202, %v204
  %v229 = vsel %vm225, %v206, %v208
  %v230 = vsel %vm225, %v210, %v212
  %v231 = vsel %vm225, %v214, %v216
  %v232 = vsel %vm225, %v218, %v220
  %v233 = vsel %vm225, %v222, %v224
  %242 = vst.msk [vmem:[%s4] sm:$0xff] %vm168, %v226
  %243 = vst.msk [vmem:[%s4 + $0x8] sm:$0xff] %vm168, %v227
  %244 = vst.msk [vmem:[%s4 + $0x10] sm:$0xff] %vm168, %v228
  %245 = vst.msk [vmem:[%s4 + $0x18] sm:$0xff] %vm168, %v229
  %246 = vst.msk [vmem:[%s4 + $0x20] sm:$0xff] %vm168, %v230
  %247 = vst.msk [vmem:[%s4 + $0x28] sm:$0xff] %vm168, %v231
  %248 = vst.msk [vmem:[%s4 + $0x30] sm:$0xff] %vm168, %v232
  %249 = vst.msk [vmem:[%s4 + $0x38] sm:$0xff] %vm168, %v233
  // Predicated region
  $region14: #{encoder_forward.5} parent=0 // pred_check
    _
  $region15: #{encoder_forward.5} parent=0 // pred_check_branch
    %251 = sbr.rel (0) target = $region17
  $region16: #{encoder_forward.5} parent=0 // pred_region
    _
  $region17: #{encoder_forward.5} parent=0 // pred_fallthru
    _
  // Predicated region
  $region18: #{encoder_forward.5} parent=0 // pred_check
    _
  $region19: #{encoder_forward.5} parent=0 // pred_check_branch
    %253 = sbr.rel (0) target = $region21
  $region20: #{encoder_forward.5} parent=0 // pred_region
    _
  $region21: #{encoder_forward.5} parent=0 // pred_fallthru
    _
  // Predicated region
  $region22: #{encoder_forward.5} parent=0 // pred_check
    _
  $region23: #{encoder_forward.5} parent=0 // pred_check_branch
    %255 = sbr.rel (0) target = $region25
  $region24: #{encoder_forward.5} parent=0 // pred_region
    _
  $region25: #{encoder_forward.5} parent=0 // pred_fallthru
    _
  // Predicated region
  $region26: #{encoder_forward.5} parent=0 // pred_check
    _
  $region27: #{encoder_forward.5} parent=0 // pred_check_branch
    %257 = sbr.rel (0) target = $region29
  $region28: #{encoder_forward.5} parent=0 // pred_region
    _
  $region29: #{encoder_forward.5} parent=0 // pred_fallthru
    _

// kernel: encoder_forward.6
$region0: #{encoder_forward.6}
  #allocation0 [shape = 'u32[]', space=smem, size = 0x4, offset = 0x4, fixed_abs, tag = 'smem constant byte address 0x4 - core index']
  #allocation1 [shape = 'u32[72,128]{1,0:T(1,128)}', space=vmem, size = 0x9000, scoped, tag = 'internal scratch']
  %s0 = inlined_call_operand.vmem [shape: s32[8,1], index: 0, kind: input, shape index: {}]
  %s1 = inlined_call_operand.vmem [shape: f32[8,8,96], index: 1, kind: input, shape index: {}]
  %s2 = inlined_call_operand.vmem [shape: f32[8,8,96], index: 2, kind: input, shape index: {}]
  %s3 = inlined_call_operand.vmem [shape: f32[32,96], index: 3, kind: input, shape index: {}]
  %s4 = inlined_call_operand.vmem [shape: f32[32,96], index: 4, kind: input, shape index: {}]
  %s5 = inlined_call_operand.vmem [shape: f32[1,96], index: 5, kind: input, shape index: {}]
  %s6 = inlined_call_operand.vmem [shape: f32[1,96], index: 6, kind: input, shape index: {}]
  %s7 = inlined_call_operand.vmem [shape: f32[8,8,64], index: 7, kind: output, shape index: {0}]
  %s8 = inlined_call_operand.hbm [shape: f32[8,64], index: 8, kind: output, shape index: {1}]
  %9 = xla_tuple %s7, %s8
  %s10 = sld [smem:[#allocation0]]
  $region53: #{encoder_forward.6} parent=0
    _
  %s12 = ssub.s32 1, %s10
  %s13 = scalar_select 0, %s12, %s10
  $region1: #{encoder_forward.6} parent=0
    #allocation2 [shape = 'u8[4096]{0}', space=vmem, size = 0x1000, scoped, tag = 'output window, operand 1, single buffered']
    #allocation3 [shape = 's32[1]{0}', space=sflag, size = 0x4, scoped, tag = 'scoped memory for encoder_forward.6']
    %14 = vsyncpa [#allocation3], 0
    // Predicated region
    $region2: #{encoder_forward.6} parent=1 // pred_check
      _
    $region3: #{encoder_forward.6} parent=1 // pred_check_branch
      %16 = sbr.rel (0) target = $region5
    $region4: #{encoder_forward.6} parent=1 // pred_region
      _
    $region5: #{encoder_forward.6} parent=1 // pred_fallthru
      _
    // Predicated region
    $region6: #{encoder_forward.6} parent=1 // pred_check
      _
    $region7: #{encoder_forward.6} parent=1 // pred_check_branch
      %18 = sbr.rel (0) target = $region9
    $region8: #{encoder_forward.6} parent=1 // pred_region
      _
    $region9: #{encoder_forward.6} parent=1 // pred_fallthru
      _
    // Predicated region
    $region10: #{encoder_forward.6} parent=1 // pred_check
      _
    $region11: #{encoder_forward.6} parent=1 // pred_check_branch
      %20 = sbr.rel (0) target = $region13
    $region12: #{encoder_forward.6} parent=1 // pred_region
      _
    $region13: #{encoder_forward.6} parent=1 // pred_fallthru
      _
    // Predicated region
    $region14: #{encoder_forward.6} parent=1 // pred_check
      _
    $region15: #{encoder_forward.6} parent=1 // pred_check_branch
      %22 = sbr.rel (0) target = $region17
    $region16: #{encoder_forward.6} parent=1 // pred_region
      _
    $region17: #{encoder_forward.6} parent=1 // pred_fallthru
      _
    // Predicated region
    $region18: #{encoder_forward.6} parent=1 // pred_check
      _
    $region19: #{encoder_forward.6} parent=1 // pred_check_branch
      %24 = sbr.rel (0) target = $region21
    $region20: #{encoder_forward.6} parent=1 // pred_region
      _
    $region21: #{encoder_forward.6} parent=1 // pred_fallthru
      _
    // Predicated region
    $region22: #{encoder_forward.6} parent=1 // pred_check
      _
    $region23: #{encoder_forward.6} parent=1 // pred_check_branch
      %26 = sbr.rel (0) target = $region25
    $region24: #{encoder_forward.6} parent=1 // pred_region
      _
    $region25: #{encoder_forward.6} parent=1 // pred_fallthru
      _
    // Predicated region
    $region26: #{encoder_forward.6} parent=1 // pred_check
      _
    $region27: #{encoder_forward.6} parent=1 // pred_check_branch
      %28 = sbr.rel (0) target = $region29
    $region28: #{encoder_forward.6} parent=1 // pred_region
      _
    $region29: #{encoder_forward.6} parent=1 // pred_fallthru
      _
    %v29 = vld [vmem:[%s0] sm:$0xff]
    loop: start=0, step=1, limit=8
    $region30: #{encoder_forward.6} parent=1 // loop_pre_header
      _
    $region31: #{encoder_forward.6} parent=1 // loop_header
      %s31 = sphi 0, %s35
      %p32 = scmp.ge.s32.totalorder %s31, 8
      %v36 = vphi 0.0, %v226
      %v37 = vphi 0.0, %v234
    $region32: #{encoder_forward.6} parent=1 // loop_header_branch
      %34 = sbr.rel (%p32) target = $region36
    $region33: #{encoder_forward.6} parent=1 // loop_body
      %s38 = ssub.s32 7, %s31
      %s39 = smul.u32 %s31, 8
      %s40 = scalar_lea.vmem %s1, %s39
      %v41 = vld [vmem:[%s40] sm:$0xff]
      %v42 = vld [vmem:[%s3] sm:$0xff]
      %v43 = vld [vmem:[%s3 + $0x8] sm:$0xff]
      %v44 = vld [vmem:[%s3 + $0x10] sm:$0xff]
      %v45 = vld [vmem:[%s3 + $0x18] sm:$0xff]
      %v46 = vld [vmem:[%s5] sm:$0x1]
      %v48 = vperm.slane %v46, 0
      %51 = vrot.lane.b32.xlu0 %v36, 96
      %v52 = vpop.permute.xlu0 %51
      %vm53 = vcmask 261120
      %v54 = vsel %vm53, %v52, 0
      %56 = vmatpush.msra.mxu0 0.0
      %57 = vmatpush.msra.mxu0 0.0
      %58 = vmatpush.msra.mxu0 0.0
      %59 = vmatpush.msra.mxu0 0.0
      %60 = vmatpush.msra.mxu0 0.0
      %61 = vmatpush.msra.mxu0 0.0
      %62 = vmatpush.msra.mxu0 0.0
      %63 = vmatpush.msra.mxu0 0.0
      %64 = vmatpush.msra.mxu0 0.0
      %65 = vmatpush.msra.mxu0 0.0
      %66 = vmatpush.msra.mxu0 0.0
      %67 = vmatpush.msra.mxu0 0.0
      %68 = vmatpush.msra.mxu0 %v45
      %69 = vmatpush.msra.mxu0 %v44
      %70 = vmatpush.msra.mxu0 %v43
      %71 = vmatpush.msra.mxu0 %v42
      %72 = vmatmul.f32.gmra.mxu0 %v54
      %v73 = vpop.f32.mrf.mxu0
      %v74 = vadd.f32 %v48, %v73
      %75 = vdwg.mxu0
      %v76 = vadd.f32 %v41, %v74
      %v77 = vxor.u32 %v76, 2147483648
      %v78 = vmul.f32 %v77, 1.442695
      %v79 = vpow.pop %v78
      %v80 = vadd.f32 %v79, 1.0
      %v81 = vrcp.pop %v80
      %v82 = vmul.f32 %v80, %v81
      %v83 = vsub.f32 1.0, %v82
      %v84 = vmul.f32 %v81, %v83
      %v85 = vadd.f32 %v81, %v84
      %vm86 = vweird.f32 %v80
      %vm87 = vweird.f32 %v81
      %vm88 = vmor %vm86, %vm87
      %v89 = vsel %vm88, %v81, %v85
      %v90 = vand.u32 2147483647, %v80
      %vm91 = vcmp.eq.f32.partialorder %v90, 8.507059e+37
      %v92 = vand.u32 %v80, 2147483648
      %v93 = vor.u32 1.1754944e-38, %v92
      %v94 = vsel %vm91, %v93, %v89
      %v95 = vmul.f32 1.0, %v94
      %97 = vrot.lane.b32.xlu0 %v74, 64
      %v98 = vpop.permute.xlu0 %97
      %v100 = vmul.f32 %v95, %v98
      %102 = vrot.lane.b32.xlu0 %v100, 64
      %v103 = vpop.permute.xlu0 %102
      %v105 = vadd.f32 %v41, %v103
      %v106 = vtanh.pop %v105
      %v107 = vsub.f32 1.0, %v95
      %109 = vrot.lane.b32.xlu0 %v106, 96
      %v110 = vpop.permute.xlu0 %109
      %v112 = vmul.f32 %v107, %v110
      %v113 = vmul.f32 %v95, %v36
      %v114 = vadd.f32 %v112, %v113
      %s115 = smul.u32 %s38, 8
      %s116 = scalar_lea.vmem %s2, %s115
      %v117 = vld [vmem:[%s116] sm:$0xff]
      %v118 = vld [vmem:[%s4] sm:$0xff]
      %v119 = vld [vmem:[%s4 + $0x8] sm:$0xff]
      %v120 = vld [vmem:[%s4 + $0x10] sm:$0xff]
      %v121 = vld [vmem:[%s4 + $0x18] sm:$0xff]
      %v122 = vld [vmem:[%s6] sm:$0x1]
      %v124 = vperm.slane %v122, 0
      %127 = vrot.lane.b32.xlu0 %v37, 96
      %v128 = vpop.permute.xlu0 %127
      %v129 = vsel %vm53, %v128, 0
      %131 = vmatpush.msra.mxu0 0.0
      %132 = vmatpush.msra.mxu0 0.0
      %133 = vmatpush.msra.mxu0 0.0
      %134 = vmatpush.msra.mxu0 0.0
      %135 = vmatpush.msra.mxu0 0.0
      %136 = vmatpush.msra.mxu0 0.0
      %137 = vmatpush.msra.mxu0 0.0
      %138 = vmatpush.msra.mxu0 0.0
      %139 = vmatpush.msra.mxu0 0.0
      %140 = vmatpush.msra.mxu0 0.0
      %141 = vmatpush.msra.mxu0 0.0
      %142 = vmatpush.msra.mxu0 0.0
      %143 = vmatpush.msra.mxu0 %v121
      %144 = vmatpush.msra.mxu0 %v120
      %145 = vmatpush.msra.mxu0 %v119
      %146 = vmatpush.msra.mxu0 %v118
      %147 = vmatmul.f32.gmra.mxu0 %v129
      %v148 = vpop.f32.mrf.mxu0
      %v149 = vadd.f32 %v124, %v148
      %150 = vdwg.mxu0
      %v151 = vadd.f32 %v117, %v149
      %v152 = vxor.u32 %v151, 2147483648
      %v153 = vmul.f32 %v152, 1.442695
      %v154 = vpow.pop %v153
      %v155 = vadd.f32 %v154, 1.0
      %v156 = vrcp.pop %v155
      %v157 = vmul.f32 %v155, %v156
      %v158 = vsub.f32 1.0, %v157
      %v159 = vmul.f32 %v156, %v158
      %v160 = vadd.f32 %v156, %v159
      %vm161 = vweird.f32 %v155
      %vm162 = vweird.f32 %v156
      %vm163 = vmor %vm161, %vm162
      %v164 = vsel %vm163, %v156, %v160
      %v165 = vand.u32 2147483647, %v155
      %vm166 = vcmp.eq.f32.partialorder %v165, 8.507059e+37
      %v167 = vand.u32 %v155, 2147483648
      %v168 = vor.u32 1.1754944e-38, %v167
      %v169 = vsel %vm166, %v168, %v164
      %v170 = vmul.f32 1.0, %v169
      %172 = vrot.lane.b32.xlu0 %v149, 64
      %v173 = vpop.permute.xlu0 %172
      %v175 = vmul.f32 %v170, %v173
      %177 = vrot.lane.b32.xlu0 %v175, 64
      %v178 = vpop.permute.xlu0 %177
      %v180 = vadd.f32 %v117, %v178
      %v181 = vtanh.pop %v180
      %v182 = vsub.f32 1.0, %v170
      %184 = vrot.lane.b32.xlu0 %v181, 96
      %v185 = vpop.permute.xlu0 %184
      %v187 = vmul.f32 %v182, %v185
      %v188 = vmul.f32 %v170, %v37
      %v189 = vadd.f32 %v187, %v188
      %v190 = vstv %s31
      %vm191 = vcmp.gt.s32.totalorder %v29, %v190
      %v192 = vsel %vm191, 1, 0
      %v193 = vcvt.s32.f32 %v192
      %v194 = vstv %s38
      %vm195 = vcmp.gt.s32.totalorder %v29, %v194
      %v196 = vsel %vm195, 1, 0
      %v197 = vcvt.s32.f32 %v196
      %199 = vset.pattern.permute.xlu0 0
      %200 = vperm.xlu0 %199, %v193
      %v201 = vpop.permute.xlu0 %200
      %v203 = vmul.f32 %v201, %v114
      %205 = vset.pattern.permute.xlu0 0
      %206 = vperm.xlu0 %205, %v197
      %v207 = vpop.permute.xlu0 %206
      %v209 = vmul.f32 %v207, %v189
      %211 = vrot.lane.b32.xlu0 %v203, 96
      %v212 = vpop.permute.xlu0 %211
      %s214 = scalar_lea.vmem %s7, %s39
      %215 = vst.msk [vmem:[%s214] sm:$0xff] %vm53, %v212
      %s216 = scalar_lea.vmem %s7, %s115
      %vm217 = vcmask 523520
      %218 = vst.msk [vmem:[%s216] sm:$0xff] %vm217, %v209
      %v219 = vsub.f32 1.0, %v193
      %221 = vset.pattern.permute.xlu0 0
      %222 = vperm.xlu0 %221, %v219
      %v223 = vpop.permute.xlu0 %222
      %v225 = vmul.f32 %v223, %v36
      %v226 = vadd.f32 %v203, %v225
      %v227 = vsub.f32 1.0, %v197
      %229 = vset.pattern.permute.xlu0 0
      %230 = vperm.xlu0 %229, %v227
      %v231 = vpop.permute.xlu0 %230
      %v233 = vmul.f32 %v231, %v37
      %v234 = vadd.f32 %v209, %v233
    $region34: #{encoder_forward.6} parent=1 // loop_footer
      %s35 = sadd.s32 1, %s31
    $region35: #{encoder_forward.6} parent=1 // loop_footer_branch
      %30 = sbr.rel target = $region31
    $region36: #{encoder_forward.6} parent=1 // loop_exit
      _
    %236 = vrot.lane.b32.xlu0 %v36, 96
    %v237 = vpop.permute.xlu0 %236
    %vm239 = vcmask 261120
    %v240 = vsel %vm239, %v237, %v37
    %vm241 = vcmask 523264
    %242 = vst.msk [vmem:[#allocation2] sm:$0xff] %vm241, %v240
    // Predicated region
    $region37: #{encoder_forward.6} parent=1 // pred_check
      _
    $region38: #{encoder_forward.6} parent=1 // pred_check_branch
      %244 = sbr.rel (0) target = $region40
    $region39: #{encoder_forward.6} parent=1 // pred_region
      _
    $region40: #{encoder_forward.6} parent=1 // pred_fallthru
      _
    // Predicated region
    $region41: #{encoder_forward.6} parent=1 // pred_check
      _
    $region42: #{encoder_forward.6} parent=1 // pred_check_branch
      %246 = sbr.rel (0) target = $region44
    $region43: #{encoder_forward.6} parent=1 // pred_region
      %248 = vsyncadd [#allocation3], 0
      %s250 = sshll.u32 [#allocation2], 4
      %s251 = int_to_ptr.vmem [resolvable:$true] %s250
      %s252 = sshll.u32 %s8, 4
      %s253 = int_to_ptr.hbm [resolvable:$true] %s252
      %255 = dma.vmem_to_hbm [thread:$0]  %s251, 128, %s253, [#allocation3]
    $region44: #{encoder_forward.6} parent=1 // pred_fallthru
      _
    // Predicated region
    $region45: #{encoder_forward.6} parent=1 // pred_check
      _
    $region46: #{encoder_forward.6} parent=1 // pred_check_branch
      %257 = sbr.rel (0) target = $region48
    $region47: #{encoder_forward.6} parent=1 // pred_region
      _
    $region48: #{encoder_forward.6} parent=1 // pred_fallthru
      _
    // Predicated region
    $region49: #{encoder_forward.6} parent=1 // pred_check
      _
    $region50: #{encoder_forward.6} parent=1 // pred_check_branch
      %259 = sbr.rel (0) target = $region52
    $region51: #{encoder_forward.6} parent=1 // pred_region
      %261 = dma.done [#allocation3], 128
    $region52: #{encoder_forward.6} parent=1 // pred_fallthru
      _
    %262 = vsyncpa [#allocation3], 1

// kernel: encoder_forward.7
$region0: #{encoder_forward.7}
  #allocation0 [shape = 'u32[]', space=smem, size = 0x4, offset = 0x4, fixed_abs, tag = 'smem constant byte address 0x4 - core index']
  #allocation1 [shape = 'u32[72,128]{1,0:T(1,128)}', space=vmem, size = 0x9000, scoped, tag = 'internal scratch']
  %s0 = inlined_call_operand.vmem [shape: f32[64,64], index: 0, kind: input, shape index: {}]
  %s1 = inlined_call_operand.vmem [shape: bf16[64,192], index: 1, kind: input, shape index: {}]
  %s2 = inlined_call_operand.vmem [shape: f32[1,192], index: 2, kind: input, shape index: {}]
  %s3 = inlined_call_operand.vmem [shape: f32[64,96], index: 3, kind: output, shape index: {0}]
  %s4 = inlined_call_operand.vmem [shape: f32[64,96], index: 4, kind: output, shape index: {1}]
  %5 = xla_tuple %s3, %s4
  %s6 = sld [smem:[#allocation0]]
  $region30: #{encoder_forward.7} parent=0
    _
  %s8 = ssub.s32 1, %s6
  %s9 = scalar_select 0, %s8, %s6
  // Predicated region
  $region2: #{encoder_forward.7} parent=0 // pred_check
    _
  $region3: #{encoder_forward.7} parent=0 // pred_check_branch
    %11 = sbr.rel (0) target = $region5
  $region4: #{encoder_forward.7} parent=0 // pred_region
    _
  $region5: #{encoder_forward.7} parent=0 // pred_fallthru
    _
  // Predicated region
  $region6: #{encoder_forward.7} parent=0 // pred_check
    _
  $region7: #{encoder_forward.7} parent=0 // pred_check_branch
    %13 = sbr.rel (0) target = $region9
  $region8: #{encoder_forward.7} parent=0 // pred_region
    _
  $region9: #{encoder_forward.7} parent=0 // pred_fallthru
    _
  // Predicated region
  $region10: #{encoder_forward.7} parent=0 // pred_check
    _
  $region11: #{encoder_forward.7} parent=0 // pred_check_branch
    %15 = sbr.rel (0) target = $region13
  $region12: #{encoder_forward.7} parent=0 // pred_region
    _
  $region13: #{encoder_forward.7} parent=0 // pred_fallthru
    _
  %v17 = vld [vmem:[%s0] sm:$0xff]
  %v18 = vld [vmem:[%s0 + $0x8] sm:$0xff]
  %v19 = vld [vmem:[%s0 + $0x10] sm:$0xff]
  %v20 = vld [vmem:[%s0 + $0x18] sm:$0xff]
  %v21 = vld [vmem:[%s0 + $0x20] sm:$0xff]
  %v22 = vld [vmem:[%s0 + $0x28] sm:$0xff]
  %v23 = vld [vmem:[%s0 + $0x30] sm:$0xff]
  %v24 = vld [vmem:[%s0 + $0x38] sm:$0xff]
  %v25 = vpack.c.bf16 %v18, %v17
  %v26 = vpack.c.bf16 %v20, %v19
  %v27 = vpack.c.bf16 %v22, %v21
  %v28 = vpack.c.bf16 %v24, %v23
  %v29 = vld [vmem:[%s1] sm:$0xff]
  %v30 = vld [vmem:[%s1 + $0x8] sm:$0xff]
  %v31 = vld [vmem:[%s1 + $0x10] sm:$0xff]
  %v32 = vld [vmem:[%s1 + $0x18] sm:$0xff]
  %v33 = vld [vmem:[%s1 + $0x20] sm:$0xff]
  %v34 = vld [vmem:[%s1 + $0x28] sm:$0xff]
  %v35 = vld [vmem:[%s1 + $0x30] sm:$0xff]
  %v36 = vld [vmem:[%s1 + $0x38] sm:$0xff]
  %v37 = vld [vmem:[%s2] sm:$0x3]
  %v39 = vperm.slane %v37, 0
  %v40 = vperm.slane %v37, 1
  %v51 = vunpack.c.l.b16 %v29
  %v52 = vunpack.c.h.b16 %v29
  %v53 = vunpack.c.l.b16 %v30
  %v54 = vunpack.c.h.b16 %v30
  %v55 = vunpack.c.l.b16 %v31
  %v56 = vunpack.c.h.b16 %v31
  %v57 = vunpack.c.l.b16 %v32
  %v58 = vunpack.c.h.b16 %v32
  %v59 = vunpack.c.l.b16 %v33
  %v60 = vunpack.c.h.b16 %v33
  %v61 = vunpack.c.l.b16 %v34
  %v62 = vunpack.c.h.b16 %v34
  %v63 = vunpack.c.l.b16 %v35
  %v64 = vunpack.c.h.b16 %v35
  %v65 = vunpack.c.l.b16 %v36
  %v66 = vunpack.c.h.b16 %v36
  %v67 = vpack.c.b16 %v53, %v51
  %v68 = vpack.c.b16 %v54, %v52
  %v69 = vpack.c.b16 %v57, %v55
  %v70 = vpack.c.b16 %v58, %v56
  %v71 = vpack.c.b16 %v61, %v59
  %v72 = vpack.c.b16 %v62, %v60
  %v73 = vpack.c.b16 %v65, %v63
  %v74 = vpack.c.b16 %v66, %v64
  %vm83 = vcmask 523264
  %v85 = vsel %vm83, %v25, 0
  %v88 = vsel %vm83, %v26, 0
  %v91 = vsel %vm83, %v27, 0
  %v94 = vsel %vm83, %v28, 0
  %96 = vmatpush.bf16.msra.mxu0 0
  %97 = vmatpush.bf16.msra.mxu0 0
  %98 = vmatpush.bf16.msra.mxu0 0
  %99 = vmatpush.bf16.msra.mxu0 0
  %100 = vmatpush.bf16.msra.mxu0 %v73
  %101 = vmatpush.bf16.msra.mxu0 %v71
  %102 = vmatpush.bf16.msra.mxu0 %v69
  %103 = vmatpush.bf16.msra.mxu0 %v67
  %104 = vmatmul.bf16.gmra.mxu0 %v85
  %v105 = vpop.f32.mrf.mxu0
  %v106 = vadd.f32 %v39, %v105
  %v107 = vpop.f32.mrf.mxu0
  %v108 = vadd.f32 %v39, %v107
  %109 = vmatmul.bf16.gmra.mxu0 %v88
  %v110 = vpop.f32.mrf.mxu0
  %v111 = vadd.f32 %v39, %v110
  %v112 = vpop.f32.mrf.mxu0
  %v113 = vadd.f32 %v39, %v112
  %114 = vmatmul.bf16.gmra.mxu0 %v91
  %v115 = vpop.f32.mrf.mxu0
  %v116 = vadd.f32 %v39, %v115
  %v117 = vpop.f32.mrf.mxu0
  %v118 = vadd.f32 %v39, %v117
  %119 = vmatmul.bf16.gmra.mxu0 %v94
  %v120 = vpop.f32.mrf.mxu0
  %v121 = vadd.f32 %v39, %v120
  %v122 = vpop.f32.mrf.mxu0
  %v123 = vadd.f32 %v39, %v122
  %124 = vdwg.mxu0
  %125 = vmatpush.bf16.msra.mxu0 0
  %126 = vmatpush.bf16.msra.mxu0 0
  %127 = vmatpush.bf16.msra.mxu0 0
  %128 = vmatpush.bf16.msra.mxu0 0
  %129 = vmatpush.bf16.msra.mxu0 %v74
  %130 = vmatpush.bf16.msra.mxu0 %v72
  %131 = vmatpush.bf16.msra.mxu0 %v70
  %132 = vmatpush.bf16.msra.mxu0 %v68
  %133 = vmatmul.bf16.gmra.mxu0 %v85
  %v134 = vpop.f32.mrf.mxu0
  %v135 = vadd.f32 %v40, %v134
  %v136 = vpop.f32.mrf.mxu0
  %v137 = vadd.f32 %v40, %v136
  %138 = vmatmul.bf16.gmra.mxu0 %v88
  %v139 = vpop.f32.mrf.mxu0
  %v140 = vadd.f32 %v40, %v139
  %v141 = vpop.f32.mrf.mxu0
  %v142 = vadd.f32 %v40, %v141
  %143 = vmatmul.bf16.gmra.mxu0 %v91
  %v144 = vpop.f32.mrf.mxu0
  %v145 = vadd.f32 %v40, %v144
  %v146 = vpop.f32.mrf.mxu0
  %v147 = vadd.f32 %v40, %v146
  %148 = vmatmul.bf16.gmra.mxu0 %v94
  %v149 = vpop.f32.mrf.mxu0
  %v150 = vadd.f32 %v40, %v149
  %v151 = vpop.f32.mrf.mxu0
  %v152 = vadd.f32 %v40, %v151
  %153 = vdwg.mxu0
  %vm154 = vcmask 785408
  %155 = vst.msk [vmem:[%s3] sm:$0xff] %vm154, %v106
  %156 = vst.msk [vmem:[%s3 + $0x8] sm:$0xff] %vm154, %v108
  %157 = vst.msk [vmem:[%s3 + $0x10] sm:$0xff] %vm154, %v111
  %158 = vst.msk [vmem:[%s3 + $0x18] sm:$0xff] %vm154, %v113
  %159 = vst.msk [vmem:[%s3 + $0x20] sm:$0xff] %vm154, %v116
  %160 = vst.msk [vmem:[%s3 + $0x28] sm:$0xff] %vm154, %v118
  %161 = vst.msk [vmem:[%s3 + $0x30] sm:$0xff] %vm154, %v121
  %162 = vst.msk [vmem:[%s3 + $0x38] sm:$0xff] %vm154, %v123
  %179 = vrot.lane.b32.xlu0 %v106, 32
  %v180 = vpop.permute.xlu0 %179
  %181 = vrot.lane.b32.xlu0 %v135, 32
  %v182 = vpop.permute.xlu0 %181
  %183 = vrot.lane.b32.xlu0 %v108, 32
  %v184 = vpop.permute.xlu0 %183
  %185 = vrot.lane.b32.xlu0 %v137, 32
  %v186 = vpop.permute.xlu0 %185
  %187 = vrot.lane.b32.xlu0 %v111, 32
  %v188 = vpop.permute.xlu0 %187
  %189 = vrot.lane.b32.xlu0 %v140, 32
  %v190 = vpop.permute.xlu0 %189
  %191 = vrot.lane.b32.xlu0 %v113, 32
  %v192 = vpop.permute.xlu0 %191
  %193 = vrot.lane.b32.xlu0 %v142, 32
  %v194 = vpop.permute.xlu0 %193
  %195 = vrot.lane.b32.xlu0 %v116, 32
  %v196 = vpop.permute.xlu0 %195
  %197 = vrot.lane.b32.xlu0 %v145, 32
  %v198 = vpop.permute.xlu0 %197
  %199 = vrot.lane.b32.xlu0 %v118, 32
  %v200 = vpop.permute.xlu0 %199
  %201 = vrot.lane.b32.xlu0 %v147, 32
  %v202 = vpop.permute.xlu0 %201
  %203 = vrot.lane.b32.xlu0 %v121, 32
  %v204 = vpop.permute.xlu0 %203
  %205 = vrot.lane.b32.xlu0 %v150, 32
  %v206 = vpop.permute.xlu0 %205
  %207 = vrot.lane.b32.xlu0 %v123, 32
  %v208 = vpop.permute.xlu0 %207
  %209 = vrot.lane.b32.xlu0 %v152, 32
  %v210 = vpop.permute.xlu0 %209
  %vm211 = vcmask 261120
  %v212 = vsel %vm211, %v180, %v182
  %v213 = vsel %vm211, %v184, %v186
  %v214 = vsel %vm211, %v188, %v190
  %v215 = vsel %vm211, %v192, %v194
  %v216 = vsel %vm211, %v196, %v198
  %v217 = vsel %vm211, %v200, %v202
  %v218 = vsel %vm211, %v204, %v206
  %v219 = vsel %vm211, %v208, %v210
  %228 = vst.msk [vmem:[%s4] sm:$0xff] %vm154, %v212
  %229 = vst.msk [vmem:[%s4 + $0x8] sm:$0xff] %vm154, %v213
  %230 = vst.msk [vmem:[%s4 + $0x10] sm:$0xff] %vm154, %v214
  %231 = vst.msk [vmem:[%s4 + $0x18] sm:$0xff] %vm154, %v215
  %232 = vst.msk [vmem:[%s4 + $0x20] sm:$0xff] %vm154, %v216
  %233 = vst.msk [vmem:[%s4 + $0x28] sm:$0xff] %vm154, %v217
  %234 = vst.msk [vmem:[%s4 + $0x30] sm:$0xff] %vm154, %v218
  %235 = vst.msk [vmem:[%s4 + $0x38] sm:$0xff] %vm154, %v219
  // Predicated region
  $region14: #{encoder_forward.7} parent=0 // pred_check
    _
  $region15: #{encoder_forward.7} parent=0 // pred_check_branch
    %237 = sbr.rel (0) target = $region17
  $region16: #{encoder_forward.7} parent=0 // pred_region
    _
  $region17: #{encoder_forward.7} parent=0 // pred_fallthru
    _
  // Predicated region
  $region18: #{encoder_forward.7} parent=0 // pred_check
    _
  $region19: #{encoder_forward.7} parent=0 // pred_check_branch
    %239 = sbr.rel (0) target = $region21
  $region20: #{encoder_forward.7} parent=0 // pred_region
    _
  $region21: #{encoder_forward.7} parent=0 // pred_fallthru
    _
  // Predicated region
  $region22: #{encoder_forward.7} parent=0 // pred_check
    _
  $region23: #{encoder_forward.7} parent=0 // pred_check_branch
    %241 = sbr.rel (0) target = $region25
  $region24: #{encoder_forward.7} parent=0 // pred_region
    _
  $region25: #{encoder_forward.7} parent=0 // pred_fallthru
    _
  // Predicated region
  $region26: #{encoder_forward.7} parent=0 // pred_check
    _
  $region27: #{encoder_forward.7} parent=0 // pred_check_branch
    %243 = sbr.rel (0) target = $region29
  $region28: #{encoder_forward.7} parent=0 // pred_region
    _
  $region29: #{encoder_forward.7} parent=0 // pred_fallthru
    _

// kernel: encoder_forward.8
$region0: #{encoder_forward.8}
  #allocation0 [shape = 'u32[]', space=smem, size = 0x4, offset = 0x4, fixed_abs, tag = 'smem constant byte address 0x4 - core index']
  #allocation1 [shape = 'u32[72,128]{1,0:T(1,128)}', space=vmem, size = 0x9000, scoped, tag = 'internal scratch']
  %s0 = inlined_call_operand.vmem [shape: s32[8,1], index: 0, kind: input, shape index: {}]
  %s1 = inlined_call_operand.vmem [shape: f32[8,8,96], index: 1, kind: input, shape index: {}]
  %s2 = inlined_call_operand.vmem [shape: f32[8,8,96], index: 2, kind: input, shape index: {}]
  %s3 = inlined_call_operand.vmem [shape: f32[32,96], index: 3, kind: input, shape index: {}]
  %s4 = inlined_call_operand.vmem [shape: f32[32,96], index: 4, kind: input, shape index: {}]
  %s5 = inlined_call_operand.vmem [shape: f32[1,96], index: 5, kind: input, shape index: {}]
  %s6 = inlined_call_operand.vmem [shape: f32[1,96], index: 6, kind: input, shape index: {}]
  %s7 = inlined_call_operand.vmem [shape: f32[8,8,64], index: 7, kind: output, shape index: {0}]
  %s8 = inlined_call_operand.vmem [shape: f32[8,64], index: 8, kind: output, shape index: {1}]
  %9 = xla_tuple %s7, %s8
  %s10 = sld [smem:[#allocation0]]
  $region53: #{encoder_forward.8} parent=0
    _
  %s12 = ssub.s32 1, %s10
  %s13 = scalar_select 0, %s12, %s10
  // Predicated region
  $region2: #{encoder_forward.8} parent=0 // pred_check
    _
  $region3: #{encoder_forward.8} parent=0 // pred_check_branch
    %15 = sbr.rel (0) target = $region5
  $region4: #{encoder_forward.8} parent=0 // pred_region
    _
  $region5: #{encoder_forward.8} parent=0 // pred_fallthru
    _
  // Predicated region
  $region6: #{encoder_forward.8} parent=0 // pred_check
    _
  $region7: #{encoder_forward.8} parent=0 // pred_check_branch
    %17 = sbr.rel (0) target = $region9
  $region8: #{encoder_forward.8} parent=0 // pred_region
    _
  $region9: #{encoder_forward.8} parent=0 // pred_fallthru
    _
  // Predicated region
  $region10: #{encoder_forward.8} parent=0 // pred_check
    _
  $region11: #{encoder_forward.8} parent=0 // pred_check_branch
    %19 = sbr.rel (0) target = $region13
  $region12: #{encoder_forward.8} parent=0 // pred_region
    _
  $region13: #{encoder_forward.8} parent=0 // pred_fallthru
    _
  // Predicated region
  $region14: #{encoder_forward.8} parent=0 // pred_check
    _
  $region15: #{encoder_forward.8} parent=0 // pred_check_branch
    %21 = sbr.rel (0) target = $region17
  $region16: #{encoder_forward.8} parent=0 // pred_region
    _
  $region17: #{encoder_forward.8} parent=0 // pred_fallthru
    _
  // Predicated region
  $region18: #{encoder_forward.8} parent=0 // pred_check
    _
  $region19: #{encoder_forward.8} parent=0 // pred_check_branch
    %23 = sbr.rel (0) target = $region21
  $region20: #{encoder_forward.8} parent=0 // pred_region
    _
  $region21: #{encoder_forward.8} parent=0 // pred_fallthru
    _
  // Predicated region
  $region22: #{encoder_forward.8} parent=0 // pred_check
    _
  $region23: #{encoder_forward.8} parent=0 // pred_check_branch
    %25 = sbr.rel (0) target = $region25
  $region24: #{encoder_forward.8} parent=0 // pred_region
    _
  $region25: #{encoder_forward.8} parent=0 // pred_fallthru
    _
  // Predicated region
  $region26: #{encoder_forward.8} parent=0 // pred_check
    _
  $region27: #{encoder_forward.8} parent=0 // pred_check_branch
    %27 = sbr.rel (0) target = $region29
  $region28: #{encoder_forward.8} parent=0 // pred_region
    _
  $region29: #{encoder_forward.8} parent=0 // pred_fallthru
    _
  %v28 = vld [vmem:[%s0] sm:$0xff]
  loop: start=0, step=1, limit=8
  $region30: #{encoder_forward.8} parent=0 // loop_pre_header
    _
  $region31: #{encoder_forward.8} parent=0 // loop_header
    %s30 = sphi 0, %s34
    %p31 = scmp.ge.s32.totalorder %s30, 8
    %v35 = vphi 0.0, %v225
    %v36 = vphi 0.0, %v233
  $region32: #{encoder_forward.8} parent=0 // loop_header_branch
    %33 = sbr.rel (%p31) target = $region36
  $region33: #{encoder_forward.8} parent=0 // loop_body
    %s37 = ssub.s32 7, %s30
    %s38 = smul.u32 %s30, 8
    %s39 = scalar_lea.vmem %s1, %s38
    %v40 = vld [vmem:[%s39] sm:$0xff]
    %v41 = vld [vmem:[%s3] sm:$0xff]
    %v42 = vld [vmem:[%s3 + $0x8] sm:$0xff]
    %v43 = vld [vmem:[%s3 + $0x10] sm:$0xff]
    %v44 = vld [vmem:[%s3 + $0x18] sm:$0xff]
    %v45 = vld [vmem:[%s5] sm:$0x1]
    %v47 = vperm.slane %v45, 0
    %50 = vrot.lane.b32.xlu0 %v35, 96
    %v51 = vpop.permute.xlu0 %50
    %vm52 = vcmask 261120
    %v53 = vsel %vm52, %v51, 0
    %55 = vmatpush.msra.mxu0 0.0
    %56 = vmatpush.msra.mxu0 0.0
    %57 = vmatpush.msra.mxu0 0.0
    %58 = vmatpush.msra.mxu0 0.0
    %59 = vmatpush.msra.mxu0 0.0
    %60 = vmatpush.msra.mxu0 0.0
    %61 = vmatpush.msra.mxu0 0.0
    %62 = vmatpush.msra.mxu0 0.0
    %63 = vmatpush.msra.mxu0 0.0
    %64 = vmatpush.msra.mxu0 0.0
    %65 = vmatpush.msra.mxu0 0.0
    %66 = vmatpush.msra.mxu0 0.0
    %67 = vmatpush.msra.mxu0 %v44
    %68 = vmatpush.msra.mxu0 %v43
    %69 = vmatpush.msra.mxu0 %v42
    %70 = vmatpush.msra.mxu0 %v41
    %71 = vmatmul.f32.gmra.mxu0 %v53
    %v72 = vpop.f32.mrf.mxu0
    %v73 = vadd.f32 %v47, %v72
    %74 = vdwg.mxu0
    %v75 = vadd.f32 %v40, %v73
    %v76 = vxor.u32 %v75, 2147483648
    %v77 = vmul.f32 %v76, 1.442695
    %v78 = vpow.pop %v77
    %v79 = vadd.f32 %v78, 1.0
    %v80 = vrcp.pop %v79
    %v81 = vmul.f32 %v79, %v80
    %v82 = vsub.f32 1.0, %v81
    %v83 = vmul.f32 %v80, %v82
    %v84 = vadd.f32 %v80, %v83
    %vm85 = vweird.f32 %v79
    %vm86 = vweird.f32 %v80
    %vm87 = vmor %vm85, %vm86
    %v88 = vsel %vm87, %v80, %v84
    %v89 = vand.u32 2147483647, %v79
    %vm90 = vcmp.eq.f32.partialorder %v89, 8.507059e+37
    %v91 = vand.u32 %v79, 2147483648
    %v92 = vor.u32 1.1754944e-38, %v91
    %v93 = vsel %vm90, %v92, %v88
    %v94 = vmul.f32 1.0, %v93
    %96 = vrot.lane.b32.xlu0 %v73, 64
    %v97 = vpop.permute.xlu0 %96
    %v99 = vmul.f32 %v94, %v97
    %101 = vrot.lane.b32.xlu0 %v99, 64
    %v102 = vpop.permute.xlu0 %101
    %v104 = vadd.f32 %v40, %v102
    %v105 = vtanh.pop %v104
    %v106 = vsub.f32 1.0, %v94
    %108 = vrot.lane.b32.xlu0 %v105, 96
    %v109 = vpop.permute.xlu0 %108
    %v111 = vmul.f32 %v106, %v109
    %v112 = vmul.f32 %v94, %v35
    %v113 = vadd.f32 %v111, %v112
    %s114 = smul.u32 %s37, 8
    %s115 = scalar_lea.vmem %s2, %s114
    %v116 = vld [vmem:[%s115] sm:$0xff]
    %v117 = vld [vmem:[%s4] sm:$0xff]
    %v118 = vld [vmem:[%s4 + $0x8] sm:$0xff]
    %v119 = vld [vmem:[%s4 + $0x10] sm:$0xff]
    %v120 = vld [vmem:[%s4 + $0x18] sm:$0xff]
    %v121 = vld [vmem:[%s6] sm:$0x1]
    %v123 = vperm.slane %v121, 0
    %126 = vrot.lane.b32.xlu0 %v36, 96
    %v127 = vpop.permute.xlu0 %126
    %v128 = vsel %vm52, %v127, 0
    %130 = vmatpush.msra.mxu0 0.0
    %131 = vmatpush.msra.mxu0 0.0
    %132 = vmatpush.msra.mxu0 0.0
    %133 = vmatpush.msra.mxu0 0.0
    %134 = vmatpush.msra.mxu0 0.0
    %135 = vmatpush.msra.mxu0 0.0
    %136 = vmatpush.msra.mxu0 0.0
    %137 = vmatpush.msra.mxu0 0.0
    %138 = vmatpush.msra.mxu0 0.0
    %139 = vmatpush.msra.mxu0 0.0
    %140 = vmatpush.msra.mxu0 0.0
    %141 = vmatpush.msra.mxu0 0.0
    %142 = vmatpush.msra.mxu0 %v120
    %143 = vmatpush.msra.mxu0 %v119
    %144 = vmatpush.msra.mxu0 %v118
    %145 = vmatpush.msra.mxu0 %v117
    %146 = vmatmul.f32.gmra.mxu0 %v128
    %v147 = vpop.f32.mrf.mxu0
    %v148 = vadd.f32 %v123, %v147
    %149 = vdwg.mxu0
    %v150 = vadd.f32 %v116, %v148
    %v151 = vxor.u32 %v150, 2147483648
    %v152 = vmul.f32 %v151, 1.442695
    %v153 = vpow.pop %v152
    %v154 = vadd.f32 %v153, 1.0
    %v155 = vrcp.pop %v154
    %v156 = vmul.f32 %v154, %v155
    %v157 = vsub.f32 1.0, %v156
    %v158 = vmul.f32 %v155, %v157
    %v159 = vadd.f32 %v155, %v158
    %vm160 = vweird.f32 %v154
    %vm161 = vweird.f32 %v155
    %vm162 = vmor %vm160, %vm161
    %v163 = vsel %vm162, %v155, %v159
    %v164 = vand.u32 2147483647, %v154
    %vm165 = vcmp.eq.f32.partialorder %v164, 8.507059e+37
    %v166 = vand.u32 %v154, 2147483648
    %v167 = vor.u32 1.1754944e-38, %v166
    %v168 = vsel %vm165, %v167, %v163
    %v169 = vmul.f32 1.0, %v168
    %171 = vrot.lane.b32.xlu0 %v148, 64
    %v172 = vpop.permute.xlu0 %171
    %v174 = vmul.f32 %v169, %v172
    %176 = vrot.lane.b32.xlu0 %v174, 64
    %v177 = vpop.permute.xlu0 %176
    %v179 = vadd.f32 %v116, %v177
    %v180 = vtanh.pop %v179
    %v181 = vsub.f32 1.0, %v169
    %183 = vrot.lane.b32.xlu0 %v180, 96
    %v184 = vpop.permute.xlu0 %183
    %v186 = vmul.f32 %v181, %v184
    %v187 = vmul.f32 %v169, %v36
    %v188 = vadd.f32 %v186, %v187
    %v189 = vstv %s30
    %vm190 = vcmp.gt.s32.totalorder %v28, %v189
    %v191 = vsel %vm190, 1, 0
    %v192 = vcvt.s32.f32 %v191
    %v193 = vstv %s37
    %vm194 = vcmp.gt.s32.totalorder %v28, %v193
    %v195 = vsel %vm194, 1, 0
    %v196 = vcvt.s32.f32 %v195
    %198 = vset.pattern.permute.xlu0 0
    %199 = vperm.xlu0 %198, %v192
    %v200 = vpop.permute.xlu0 %199
    %v202 = vmul.f32 %v200, %v113
    %204 = vset.pattern.permute.xlu0 0
    %205 = vperm.xlu0 %204, %v196
    %v206 = vpop.permute.xlu0 %205
    %v208 = vmul.f32 %v206, %v188
    %210 = vrot.lane.b32.xlu0 %v202, 96
    %v211 = vpop.permute.xlu0 %210
    %s213 = scalar_lea.vmem %s7, %s38
    %214 = vst.msk [vmem:[%s213] sm:$0xff] %vm52, %v211
    %s215 = scalar_lea.vmem %s7, %s114
    %vm216 = vcmask 523520
    %217 = vst.msk [vmem:[%s215] sm:$0xff] %vm216, %v208
    %v218 = vsub.f32 1.0, %v192
    %220 = vset.pattern.permute.xlu0 0
    %221 = vperm.xlu0 %220, %v218
    %v222 = vpop.permute.xlu0 %221
    %v224 = vmul.f32 %v222, %v35
    %v225 = vadd.f32 %v202, %v224
    %v226 = vsub.f32 1.0, %v196
    %228 = vset.pattern.permute.xlu0 0
    %229 = vperm.xlu0 %228, %v226
    %v230 = vpop.permute.xlu0 %229
    %v232 = vmul.f32 %v230, %v36
    %v233 = vadd.f32 %v208, %v232
  $region34: #{encoder_forward.8} parent=0 // loop_footer
    %s34 = sadd.s32 1, %s30
  $region35: #{encoder_forward.8} parent=0 // loop_footer_branch
    %29 = sbr.rel target = $region31
  $region36: #{encoder_forward.8} parent=0 // loop_exit
    _
  %235 = vrot.lane.b32.xlu0 %v35, 96
  %v236 = vpop.permute.xlu0 %235
  %vm238 = vcmask 261120
  %v239 = vsel %vm238, %v236, %v36
  %vm240 = vcmask 523264
  %241 = vst.msk [vmem:[%s8] sm:$0xff] %vm240, %v239
  // Predicated region
  $region37: #{encoder_forward.8} parent=0 // pred_check
    _
  $region38: #{encoder_forward.8} parent=0 // pred_check_branch
    %243 = sbr.rel (0) target = $region40
  $region39: #{encoder_forward.8} parent=0 // pred_region
    _
  $region40: #{encoder_forward.8} parent=0 // pred_fallthru
    _
  // Predicated region
  $region41: #{encoder_forward.8} parent=0 // pred_check
    _
  $region42: #{encoder_forward.8} parent=0 // pred_check_branch
    %245 = sbr.rel (0) target = $region44
  $region43: #{encoder_forward.8} parent=0 // pred_region
    _
  $region44: #{encoder_forward.8} parent=0 // pred_fallthru
    _
  // Predicated region
  $region45: #{encoder_forward.8} parent=0 // pred_check
    _
  $region46: #{encoder_forward.8} parent=0 // pred_check_branch
    %247 = sbr.rel (0) target = $region48
  $region47: #{encoder_forward.8} parent=0 // pred_region
    _
  $region48: #{encoder_forward.8} parent=0 // pred_fallthru
    _
  // Predicated region
  $region49: #{encoder_forward.8} parent=0 // pred_check
    _
  $region50: #{encoder_forward.8} parent=0 // pred_check_branch
    %249 = sbr.rel (0) target = $region52
  $region51: #{encoder_forward.8} parent=0 // pred_region
    _
  $region52: #{encoder_forward.8} parent=0 // pred_fallthru
    _

// kernel: encoder_forward.9
$region0: #{encoder_forward.9}
  #allocation0 [shape = 'u32[]', space=smem, size = 0x4, offset = 0x4, fixed_abs, tag = 'smem constant byte address 0x4 - core index']
  #allocation1 [shape = 'u32[72,128]{1,0:T(1,128)}', space=vmem, size = 0x9000, scoped, tag = 'internal scratch']
  %s0 = inlined_call_operand.vmem [shape: f32[8,64], index: 0, kind: input, shape index: {}]
  %s1 = inlined_call_operand.vmem [shape: f32[64,32], index: 1, kind: input, shape index: {}]
  %s2 = inlined_call_operand.vmem [shape: f32[1,32], index: 2, kind: input, shape index: {}]
  %s3 = inlined_call_operand.vmem [shape: f32[8,32], index: 3, kind: output, shape index: {}]
  %s4 = sld [smem:[#allocation0]]
  $region22: #{encoder_forward.9} parent=0
    _
  %s6 = ssub.s32 1, %s4
  %s7 = scalar_select 0, %s6, %s4
  // Predicated region
  $region2: #{encoder_forward.9} parent=0 // pred_check
    _
  $region3: #{encoder_forward.9} parent=0 // pred_check_branch
    %9 = sbr.rel (0) target = $region5
  $region4: #{encoder_forward.9} parent=0 // pred_region
    _
  $region5: #{encoder_forward.9} parent=0 // pred_fallthru
    _
  // Predicated region
  $region6: #{encoder_forward.9} parent=0 // pred_check
    _
  $region7: #{encoder_forward.9} parent=0 // pred_check_branch
    %11 = sbr.rel (0) target = $region9
  $region8: #{encoder_forward.9} parent=0 // pred_region
    _
  $region9: #{encoder_forward.9} parent=0 // pred_fallthru
    _
  // Predicated region
  $region10: #{encoder_forward.9} parent=0 // pred_check
    _
  $region11: #{encoder_forward.9} parent=0 // pred_check_branch
    %13 = sbr.rel (0) target = $region13
  $region12: #{encoder_forward.9} parent=0 // pred_region
    _
  $region13: #{encoder_forward.9} parent=0 // pred_fallthru
    _
  %v14 = vld [vmem:[%s0] sm:$0xff]
  %v15 = vld [vmem:[%s1] sm:$0xff]
  %v16 = vld [vmem:[%s1 + $0x8] sm:$0xff]
  %v17 = vld [vmem:[%s1 + $0x10] sm:$0xff]
  %v18 = vld [vmem:[%s1 + $0x18] sm:$0xff]
  %v19 = vld [vmem:[%s1 + $0x20] sm:$0xff]
  %v20 = vld [vmem:[%s1 + $0x28] sm:$0xff]
  %v21 = vld [vmem:[%s1 + $0x30] sm:$0xff]
  %v22 = vld [vmem:[%s1 + $0x38] sm:$0xff]
  %v23 = vld [vmem:[%s2] sm:$0x1]
  %v25 = vperm.slane %v23, 0
  %vm27 = vcmask 523264
  %v29 = vsel %vm27, %v14, 0
  %31 = vmatpush.msra.mxu0 0.0
  %32 = vmatpush.msra.mxu0 0.0
  %33 = vmatpush.msra.mxu0 0.0
  %34 = vmatpush.msra.mxu0 0.0
  %35 = vmatpush.msra.mxu0 0.0
  %36 = vmatpush.msra.mxu0 0.0
  %37 = vmatpush.msra.mxu0 0.0
  %38 = vmatpush.msra.mxu0 0.0
  %39 = vmatpush.msra.mxu0 %v22
  %40 = vmatpush.msra.mxu0 %v21
  %41 = vmatpush.msra.mxu0 %v20
  %42 = vmatpush.msra.mxu0 %v19
  %43 = vmatpush.msra.mxu0 %v18
  %44 = vmatpush.msra.mxu0 %v17
  %45 = vmatpush.msra.mxu0 %v16
  %46 = vmatpush.msra.mxu0 %v15
  %47 = vmatmul.f32.gmra.mxu0 %v29
  %v48 = vpop.f32.mrf.mxu0
  %v49 = vadd.f32 %v25, %v48
  %50 = vdwg.mxu0
  %v51 = vtanh.pop %v49
  %vm52 = vcmask 261120
  %53 = vst.msk [vmem:[%s3] sm:$0xff] %vm52, %v51
  // Predicated region
  $region14: #{encoder_forward.9} parent=0 // pred_check
    _
  $region15: #{encoder_forward.9} parent=0 // pred_check_branch
    %55 = sbr.rel (0) target = $region17
  $region16: #{encoder_forward.9} parent=0 // pred_region
    _
  $region17: #{encoder_forward.9} parent=0 // pred_fallthru
    _
  // Predicated region
  $region18: #{encoder_forward.9} parent=0 // pred_check
    _
  $region19: #{encoder_forward.9} parent=0 // pred_check_branch
    %57 = sbr.rel (0) target = $region21
  $region20: #{encoder_forward.9} parent=0 // pred_region
    _
  $region21: #{encoder_forward.9} parent=0 // pred_fallthru
    _

</llo_original>
